<compile_context>
chip_gen: v7x
topology: tpu7x:2x2x1
jax: 0.10.0
libtpu: 0.0.40
codegen_flags: <defaults>
</compile_context>

<pallas_src>
import jax
import jax.numpy as jnp
from jax.experimental import pallas as pl
from jax.experimental.pallas import tpu as pltpu

_VMEM_LIMIT = 48 * 1024 * 1024   # safe on v7x (64 MiB physical) and v5e/v6e (128 MiB)


def _round_up(x, m):
    return (x + m - 1) // m * m


def _pick_tc(T):
    # Largest timestep block (<=32) that divides T.
    for tc in (32, 16, 8, 4, 2, 1):
        if T % tc == 0:
            return tc
    return 1


# ---------------------------------------------------------------------------
# Tiled dense projection: (N, K) @ (K, M) + b -> (N, M), bf16 MXU operands,
# f32 accumulation.  Grid is (M-tiles OUTER, row-tiles INNER) so the weight
# tile index only changes on the outer axis -> W is DMA'd from HBM once total.
# Used for (a) the hoisted LSTM input projection and (b) the vocab projection.
# ---------------------------------------------------------------------------
def _linear_kernel(x_ref, w_ref, b_ref, o_ref):
    o_ref[...] = (jnp.dot(x_ref[...].astype(jnp.bfloat16), w_ref[...],
                          preferred_element_type=jnp.float32)
                  + b_ref[...]).astype(o_ref.dtype)


def linear(x, w_t, b, *, tm_max=256, tn_max=1024, out_dtype=jnp.float32):
    """x: (N, K), w_t: (K, M) bf16, b: (M,) f32 -> (N, M) out_dtype."""
    N, K = x.shape
    M = w_t.shape[1]
    tm = min(tm_max, _round_up(N, 8))
    tn = min(tn_max, _round_up(M, 128))
    Np = _round_up(N, tm)
    Mp = _round_up(M, tn)

    xp = x if Np == N else jnp.pad(x, ((0, Np - N), (0, 0)))
    wp = w_t if Mp == M else jnp.pad(w_t, ((0, 0), (0, Mp - M)))
    bp = (b if Mp == M else jnp.pad(b, (0, Mp - M))).reshape(1, Mp)

    # TODO(synk): add a K-axis reduction grid (f32 accumulator scratch) if K ever
    # exceeds a few thousand; for E/H-sized K the full-K block fits VMEM easily.
    out = pl.pallas_call(
        _linear_kernel,
        out_shape=jax.ShapeDtypeStruct((Np, Mp), out_dtype),
        grid=(Mp // tn, Np // tm),                       # M outer, rows inner
        in_specs=[pl.BlockSpec((tm, K), lambda j, i: (i, 0)),
                  pl.BlockSpec((K, tn), lambda j, i: (0, j)),   # constant along inner axis
                  pl.BlockSpec((1, tn), lambda j, i: (0, j))],
        out_specs=pl.BlockSpec((tm, tn), lambda j, i: (i, j)),
        compiler_params=pltpu.CompilerParams(
            dimension_semantics=("parallel", "parallel"),
            vmem_limit_bytes=_VMEM_LIMIT),
    )(xp, wp, bp)
    return out[:N, :M]


# ---------------------------------------------------------------------------
# LSTM recurrence kernel: grid over blocks of Tc timesteps, h/c carried in VMEM
# scratch (f32).  Input gates (x @ W_ih^T + b) are precomputed; per step only a
# single fused (B,H)@(H,4H) bf16 matmul + f32 elementwise cell update runs here.
# Gate order matches PyTorch nn.LSTM: [i, f, g, o] along the 4H axis.
# ---------------------------------------------------------------------------
def _lstm_recurrent_kernel(gx_ref, h0_ref, c0_ref, whh_ref,
                           hseq_ref, hfin_ref, cfin_ref, h_sc, c_sc):
    H = h0_ref.shape[-1]
    tc = pl.program_id(0)

    @pl.when(tc == 0)
    def _():
        h_sc[...] = h0_ref[...]
        c_sc[...] = c0_ref[...]

    Tc = hseq_ref.shape[0]

    def step(j, carry):
        h = h_sc[...]
        c = c_sc[...]
        # One fused recurrent matmul per step: bf16 operands, f32 accumulation.
        g_all = gx_ref[j] + jnp.dot(h.astype(jnp.bfloat16), whh_ref[...],
                                    preferred_element_type=jnp.float32)
        # TODO(synk): for H >= ~1024, chunk this elementwise section over lane
        # tiles to keep the live vreg set under ~48 vregs (avoid spills).
        i_g = jax.nn.sigmoid(g_all[:, 0 * H:1 * H])
        f_g = jax.nn.sigmoid(g_all[:, 1 * H:2 * H])
        g_g = jnp.tanh(g_all[:, 2 * H:3 * H])
        o_g = jax.nn.sigmoid(g_all[:, 3 * H:4 * H])
        c_new = f_g * c + i_g * g_g
        h_new = o_g * jnp.tanh(c_new)
        h_sc[...] = h_new
        c_sc[...] = c_new
        hseq_ref[j] = h_new.astype(hseq_ref.dtype)
        return carry

    jax.lax.fori_loop(0, Tc, step, 0, unroll=min(8, Tc))

    # Written every grid step (tiny (B,H) VMEM stores; last write wins) so we do
    # not rely on revisit semantics of a pl.when-guarded constant-index output.
    hfin_ref[...] = h_sc[...]
    cfin_ref[...] = c_sc[...]


def lstm_layer(gates_x, h0, c0, whh_t):
    """One nn.LSTM layer given precomputed input gates.

    gates_x: (T, B, 4H) f32  -- x @ W_ih^T + (b_ih + b_hh)
    h0, c0 : (B, H) f32
    whh_t  : (H, 4H) bf16    -- W_hh^T packed once
    Returns h_seq (T, B, H) bf16, h_final (B, H) f32, c_final (B, H) f32.
    """
    T, B, H4 = gates_x.shape
    H = H4 // 4
    Tc = _pick_tc(T)

    # TODO(synk): for v7x at very large H (>=2048), single-buffer whh_t
    # (memory_space=pl.ANY + one manual copy into VMEM scratch) and/or split the
    # batch over a leading CORE_PARALLEL grid axis to use both TensorCores.
    grid_spec = pltpu.PrefetchScalarGridSpec(
        num_scalar_prefetch=0,
        grid=(T // Tc,),
        in_specs=[
            pl.BlockSpec((Tc, B, H4), lambda t: (t, 0, 0)),
            # Resident inputs (constant index maps): fetched once, kept in VMEM.
            pl.BlockSpec((B, H), lambda t: (0, 0)),
            pl.BlockSpec((B, H), lambda t: (0, 0)),
            pl.BlockSpec((H, H4), lambda t: (0, 0)),
        ],
        out_specs=[
            pl.BlockSpec((Tc, B, H), lambda t: (t, 0, 0)),
            pl.BlockSpec((B, H), lambda t: (0, 0)),
            pl.BlockSpec((B, H), lambda t: (0, 0)),
        ],
        scratch_shapes=[pltpu.VMEM((B, H), jnp.float32),
                        pltpu.VMEM((B, H), jnp.float32)],
    )

    h_seq, h_fin, c_fin = pl.pallas_call(
        _lstm_recurrent_kernel,
        grid_spec=grid_spec,
        out_shape=(jax.ShapeDtypeStruct((T, B, H), jnp.bfloat16),
                   jax.ShapeDtypeStruct((B, H), jnp.float32),
                   jax.ShapeDtypeStruct((B, H), jnp.float32)),
        compiler_params=pltpu.CompilerParams(
            dimension_semantics=("arbitrary",),           # time is serial
            vmem_limit_bytes=_VMEM_LIMIT),
    )(gates_x, h0, c0, whh_t)
    return h_seq, h_fin, c_fin


# ---------------------------------------------------------------------------
# Parameter init (matches LSTMGenerator.__init__ / init_weights semantics)
# ---------------------------------------------------------------------------
def init_params(key, vocab_size, embedding_dim, hidden_dim, layers_num):
    keys = jax.random.split(key, 2 + 4 * layers_num)
    initrange = 0.1
    emb_w = jax.random.uniform(keys[0], (vocab_size, embedding_dim), jnp.float32,
                               -initrange, initrange)
    out_w = jax.random.uniform(keys[1], (vocab_size, hidden_dim), jnp.float32,
                               -initrange, initrange)
    out_b = jnp.zeros((vocab_size,), jnp.float32)

    k = 1.0 / (hidden_dim ** 0.5)          # PyTorch default LSTM init range
    lstm_params = []
    for l in range(layers_num):
        in_dim = embedding_dim if l == 0 else hidden_dim
        kk = keys[2 + 4 * l: 2 + 4 * (l + 1)]
        w_ih = jax.random.uniform(kk[0], (4 * hidden_dim, in_dim), jnp.float32, -k, k)
        w_hh = jax.random.uniform(kk[1], (4 * hidden_dim, hidden_dim), jnp.float32, -k, k)
        b_ih = jax.random.uniform(kk[2], (4 * hidden_dim,), jnp.float32, -k, k)
        b_hh = jax.random.uniform(kk[3], (4 * hidden_dim,), jnp.float32, -k, k)
        lstm_params.append((w_ih, w_hh, b_ih, b_hh))
    return emb_w, lstm_params, out_w, out_b


def pack_params(params):
    """One-time weight packing: transposed, bias-folded, bf16 MXU operands.
    Done once outside the forward so no per-call XLA transposes / HBM round-trips."""
    emb_w, lstm_params, out_w, out_b = params
    packed_lstm = []
    for (w_ih, w_hh, b_ih, b_hh) in lstm_params:
        packed_lstm.append((
            jnp.asarray(w_ih.T, jnp.bfloat16),        # (in_dim, 4H)
            jnp.asarray(w_hh.T, jnp.bfloat16),        # (H, 4H)
            (b_ih + b_hh).astype(jnp.float32),        # (4H,)
        ))
    return (jnp.asarray(emb_w, jnp.bfloat16),         # gathered values feed a bf16 matmul
            packed_lstm,
            jnp.asarray(out_w.T, jnp.bfloat16),       # (H, V)
            jnp.asarray(out_b, jnp.float32))


# ---------------------------------------------------------------------------
# Forward pass ≡ LSTMGenerator.forward(input, hidden)
# ---------------------------------------------------------------------------
def lstm_generator_forward(tokens, hidden, packed_params):
    emb_w, lstm_params, out_w_t, out_b = packed_params
    h0, c0 = hidden                                   # each (L, B, H) f32
    T, B = tokens.shape
    H = h0.shape[-1]
    V = out_w_t.shape[1]

    # Embedding gather kept in plain JAX (irregular gather; glue, not hot path).
    emb = jnp.take(emb_w, tokens, axis=0)             # (T, B, E) bf16

    # Pad batch to the f32 sublane height (8); padded rows are sliced off at the end.
    Bp = max(8, _round_up(B, 8))
    if Bp != B:
        emb = jnp.pad(emb, ((0, 0), (0, Bp - B), (0, 0)))
        h0 = jnp.pad(h0, ((0, 0), (0, Bp - B), (0, 0)))
        c0 = jnp.pad(c0, ((0, 0), (0, Bp - B), (0, 0)))

    # TODO(synk): optional wavefront pipelining of layers over time blocks.
    x = emb
    h_fins, c_fins = [], []
    for l, (w_ih_t, w_hh_t, b) in enumerate(lstm_params):
        in_dim = x.shape[-1]
        # Hoisted input projection over ALL timesteps; tn spans the full 4H width
        # (capped at 2048) so both x and W_ih are read from HBM once.
        tn = min(2048, _round_up(4 * H, 128))
        gx = linear(x.reshape(T * Bp, in_dim), w_ih_t, b, tn_max=tn)   # (T*Bp, 4H) f32
        gates_x = gx.reshape(T, Bp, 4 * H)                             # free reshape, no transpose
        h_seq, h_fin, c_fin = lstm_layer(gates_x, h0[l], c0[l], w_hh_t)
        h_fins.append(h_fin)
        c_fins.append(c_fin)
        x = h_seq                                     # (T, Bp, H) bf16 -> next layer

    # hidden2word on the flattened sequence, tiled over (vocab, rows).
    logits = linear(x.reshape(T * Bp, H), out_w_t, out_b)              # (T*Bp, V) f32
    voc_space = logits.reshape(T, Bp, V)[:, :B]
    h_n = jnp.stack(h_fins, axis=0)[:, :B]            # (L, B, H) f32
    c_n = jnp.stack(c_fins, axis=0)[:, :B]            # (L, B, H) f32
    return voc_space, (h_n, c_n)


if __name__ == "__main__":
    T, B = 8, 2
    VOCAB, E, H, L = 32, 16, 32, 2

    key = jax.random.PRNGKey(0)
    pkey, tkey = jax.random.split(key)
    params = init_params(pkey, VOCAB, E, H, L)
    packed = pack_params(params)
    tokens = jax.random.randint(tkey, (T, B), 0, VOCAB, dtype=jnp.int32)

    # init_hidden(bsz): zeros of shape (layers_num, bsz, hidden_dim)
    h0 = jnp.zeros((L, B, H), jnp.float32)
    c0 = jnp.zeros((L, B, H), jnp.float32)

    fwd = jax.jit(lstm_generator_forward)
    voc_space, (h_n, c_n) = fwd(tokens, (h0, c0), packed)
    jax.block_until_ready((voc_space, h_n, c_n))

    assert voc_space.shape == (T, B, VOCAB)
    assert h_n.shape == (L, B, H) and c_n.shape == (L, B, H)
    assert bool(jnp.all(jnp.isfinite(voc_space)))
    assert bool(jnp.all(jnp.isfinite(h_n))) and bool(jnp.all(jnp.isfinite(c_n)))
    print("KERNEL_OK")
</pallas_src>

<mosaic_0001>
module attributes {stable_mosaic.version = 11 : i64} {
  func.func @_linear_kernel(%arg0: i32, %arg1: i32, %arg2: memref<64x16xbf16, #tpu.memory_space<vmem>>, %arg3: memref<16x128xbf16, #tpu.memory_space<vmem>>, %arg4: memref<1x128xf32, #tpu.memory_space<vmem>>, %arg5: memref<64x128xf32, #tpu.memory_space<vmem>>) attributes {dimension_semantics = [#tpu.dimension_semantics<parallel>, #tpu.dimension_semantics<parallel>], iteration_bounds = array<i64: 1, 1>, scalar_prefetch = 0 : i64, scratch_operands = 0 : i64, tpu.core_type = #tpu.core_type<tc>, window_params = [{transform_indices = @transform_0, window_bounds = array<i64: 64, 16>}, {transform_indices = @transform_1, window_bounds = array<i64: 16, 128>}, {transform_indices = @transform_2, window_bounds = array<i64: 1, 128>}, {transform_indices = @transform_3, window_bounds = array<i64: 64, 128>}]} {
    %c0 = arith.constant 0 : index
    %c0_0 = arith.constant 0 : index
    %0 = vector.load %arg2[%c0, %c0_0] : memref<64x16xbf16, #tpu.memory_space<vmem>>, vector<64x16xbf16>
    %c0_1 = arith.constant 0 : index
    %c0_2 = arith.constant 0 : index
    %1 = vector.load %arg3[%c0_1, %c0_2] : memref<16x128xbf16, #tpu.memory_space<vmem>>, vector<16x128xbf16>
    %cst = arith.constant dense<0.000000e+00> : vector<64x128xf32>
    %2 = tpu.matmul %0, %1, %cst {dimension_numbers = #tpu.dot_dimension_numbers<[1], [0], [0], [1], [0, 0, 1, 1], [], []>} : vector<64x16xbf16>, vector<16x128xbf16>, vector<64x128xf32> -> vector<64x128xf32>
    %c0_3 = arith.constant 0 : index
    %c0_4 = arith.constant 0 : index
    %3 = vector.load %arg4[%c0_3, %c0_4] : memref<1x128xf32, #tpu.memory_space<vmem>>, vector<1x128xf32>
    %4 = vector.broadcast %3 : vector<1x128xf32> to vector<64x128xf32>
    %5 = arith.addf %2, %4 : vector<64x128xf32>
    %c0_5 = arith.constant 0 : index
    %c0_6 = arith.constant 0 : index
    %6 = vector.load %arg5[%c0_5, %c0_6] : memref<64x128xf32, #tpu.memory_space<vmem>>, vector<64x128xf32>
    tpu.vector_store %arg5[%c0_5, %c0_6], %5 {strides = array<i32>} : memref<64x128xf32, #tpu.memory_space<vmem>>, vector<64x128xf32>,
    return
  }
  func.func @transform_0(%arg0: i32, %arg1: i32) -> (i32, i32) {
    %c0_i32 = arith.constant 0 : i32
    %c0_i32_0 = arith.constant 0 : i32
    return %arg1, %c0_i32 : i32, i32
  }
  func.func @transform_1(%arg0: i32, %arg1: i32) -> (i32, i32) {
    %c0_i32 = arith.constant 0 : i32
    %c0_i32_0 = arith.constant 0 : i32
    return %c0_i32, %arg0 : i32, i32
  }
  func.func @transform_2(%arg0: i32, %arg1: i32) -> (i32, i32) {
    %c0_i32 = arith.constant 0 : i32
    %c0_i32_0 = arith.constant 0 : i32
    return %c0_i32, %arg0 : i32, i32
  }
  func.func @transform_3(%arg0: i32, %arg1: i32) -> (i32, i32) {
    %c0_i32 = arith.constant 0 : i32
    return %arg1, %arg0 : i32, i32
  }
}

module attributes {stable_mosaic.version = 11 : i64} {
  func.func @_linear_kernel(%arg0: i32, %arg1: i32, %arg2: memref<64x32xbf16, #tpu.memory_space<vmem>>, %arg3: memref<32x128xbf16, #tpu.memory_space<vmem>>, %arg4: memref<1x128xf32, #tpu.memory_space<vmem>>, %arg5: memref<64x128xf32, #tpu.memory_space<vmem>>) attributes {dimension_semantics = [#tpu.dimension_semantics<parallel>, #tpu.dimension_semantics<parallel>], iteration_bounds = array<i64: 1, 1>, scalar_prefetch = 0 : i64, scratch_operands = 0 : i64, tpu.core_type = #tpu.core_type<tc>, window_params = [{transform_indices = @transform_0, window_bounds = array<i64: 64, 32>}, {transform_indices = @transform_1, window_bounds = array<i64: 32, 128>}, {transform_indices = @transform_2, window_bounds = array<i64: 1, 128>}, {transform_indices = @transform_3, window_bounds = array<i64: 64, 128>}]} {
    %c0 = arith.constant 0 : index
    %c0_0 = arith.constant 0 : index
    %0 = vector.load %arg2[%c0, %c0_0] : memref<64x32xbf16, #tpu.memory_space<vmem>>, vector<64x32xbf16>
    %c0_1 = arith.constant 0 : index
    %c0_2 = arith.constant 0 : index
    %1 = vector.load %arg3[%c0_1, %c0_2] : memref<32x128xbf16, #tpu.memory_space<vmem>>, vector<32x128xbf16>
    %cst = arith.constant dense<0.000000e+00> : vector<64x128xf32>
    %2 = tpu.matmul %0, %1, %cst {dimension_numbers = #tpu.dot_dimension_numbers<[1], [0], [0], [1], [0, 0, 1, 1], [], []>} : vector<64x32xbf16>, vector<32x128xbf16>, vector<64x128xf32> -> vector<64x128xf32>
    %c0_3 = arith.constant 0 : index
    %c0_4 = arith.constant 0 : index
    %3 = vector.load %arg4[%c0_3, %c0_4] : memref<1x128xf32, #tpu.memory_space<vmem>>, vector<1x128xf32>
    %4 = vector.broadcast %3 : vector<1x128xf32> to vector<64x128xf32>
    %5 = arith.addf %2, %4 : vector<64x128xf32>
    %c0_5 = arith.constant 0 : index
    %c0_6 = arith.constant 0 : index
    %6 = vector.load %arg5[%c0_5, %c0_6] : memref<64x128xf32, #tpu.memory_space<vmem>>, vector<64x128xf32>
    tpu.vector_store %arg5[%c0_5, %c0_6], %5 {strides = array<i32>} : memref<64x128xf32, #tpu.memory_space<vmem>>, vector<64x128xf32>,
    return
  }
  func.func @transform_0(%arg0: i32, %arg1: i32) -> (i32, i32) {
    %c0_i32 = arith.constant 0 : i32
    %c0_i32_0 = arith.constant 0 : i32
    return %arg1, %c0_i32 : i32, i32
  }
  func.func @transform_1(%arg0: i32, %arg1: i32) -> (i32, i32) {
    %c0_i32 = arith.constant 0 : i32
    %c0_i32_0 = arith.constant 0 : i32
    return %c0_i32, %arg0 : i32, i32
  }
  func.func @transform_2(%arg0: i32, %arg1: i32) -> (i32, i32) {
    %c0_i32 = arith.constant 0 : i32
    %c0_i32_0 = arith.constant 0 : i32
    return %c0_i32, %arg0 : i32, i32
  }
  func.func @transform_3(%arg0: i32, %arg1: i32) -> (i32, i32) {
    %c0_i32 = arith.constant 0 : i32
    return %arg1, %arg0 : i32, i32
  }
}

module attributes {stable_mosaic.version = 11 : i64} {
  func.func @_lstm_recurrent_kernel(%arg0: i32, %arg1: memref<8x8x128xf32, #tpu.memory_space<vmem>>, %arg2: memref<8x32xf32, #tpu.memory_space<vmem>>, %arg3: memref<8x32xf32, #tpu.memory_space<vmem>>, %arg4: memref<32x128xbf16, #tpu.memory_space<vmem>>, %arg5: memref<8x8x32xbf16, #tpu.memory_space<vmem>>, %arg6: memref<8x32xf32, #tpu.memory_space<vmem>>, %arg7: memref<8x32xf32, #tpu.memory_space<vmem>>, %arg8: memref<8x32xf32, #tpu.memory_space<vmem>>, %arg9: memref<8x32xf32, #tpu.memory_space<vmem>>) attributes {dimension_semantics = [#tpu.dimension_semantics<arbitrary>], iteration_bounds = array<i64: 1>, scalar_prefetch = 0 : i64, scratch_operands = 2 : i64, tpu.core_type = #tpu.core_type<tc>, window_params = [{transform_indices = @transform_0, window_bounds = array<i64: 8, 8, 128>}, {pipeline_mode = #tpu.pipeline_mode<synchronous>, transform_indices = @transform_1, window_bounds = array<i64: 8, 32>}, {pipeline_mode = #tpu.pipeline_mode<synchronous>, transform_indices = @transform_2, window_bounds = array<i64: 8, 32>}, {pipeline_mode = #tpu.pipeline_mode<synchronous>, transform_indices = @transform_3, window_bounds = array<i64: 32, 128>}, {transform_indices = @transform_4, window_bounds = array<i64: 8, 8, 32>}, {pipeline_mode = #tpu.pipeline_mode<synchronous>, transform_indices = @transform_5, window_bounds = array<i64: 8, 32>}, {pipeline_mode = #tpu.pipeline_mode<synchronous>, transform_indices = @transform_6, window_bounds = array<i64: 8, 32>}]} {
    %c0_i32 = arith.constant 0 : i32
    %0 = arith.cmpi eq, %arg0, %c0_i32 : i32
    %1 = arith.extui %0 : i1 to i32
    %c0_i32_0 = arith.constant 0 : i32
    %2 = arith.cmpi ne, %1, %c0_i32_0 : i32
    scf.if %2 {
      %c0_152 = arith.constant 0 : index
      %c0_153 = arith.constant 0 : index
      %335 = vector.load %arg2[%c0_152, %c0_153] : memref<8x32xf32, #tpu.memory_space<vmem>>, vector<8x32xf32>
      %c0_154 = arith.constant 0 : index
      %c0_155 = arith.constant 0 : index
      %336 = vector.load %arg8[%c0_154, %c0_155] : memref<8x32xf32, #tpu.memory_space<vmem>>, vector<8x32xf32>
      tpu.vector_store %arg8[%c0_154, %c0_155], %335 {strides = array<i32>} : memref<8x32xf32, #tpu.memory_space<vmem>>, vector<8x32xf32>,
      %c0_156 = arith.constant 0 : index
      %c0_157 = arith.constant 0 : index
      %337 = vector.load %arg3[%c0_156, %c0_157] : memref<8x32xf32, #tpu.memory_space<vmem>>, vector<8x32xf32>
      %c0_158 = arith.constant 0 : index
      %c0_159 = arith.constant 0 : index
      %338 = vector.load %arg9[%c0_158, %c0_159] : memref<8x32xf32, #tpu.memory_space<vmem>>, vector<8x32xf32>
      tpu.vector_store %arg9[%c0_158, %c0_159], %337 {strides = array<i32>} : memref<8x32xf32, #tpu.memory_space<vmem>>, vector<8x32xf32>,
    } else {
    }
    %c0_i32_1 = arith.constant 0 : i32
    %c0 = arith.constant 0 : index
    %c0_2 = arith.constant 0 : index
    %3 = vector.load %arg8[%c0, %c0_2] : memref<8x32xf32, #tpu.memory_space<vmem>>, vector<8x32xf32>
    %c0_3 = arith.constant 0 : index
    %c0_4 = arith.constant 0 : index
    %4 = vector.load %arg9[%c0_3, %c0_4] : memref<8x32xf32, #tpu.memory_space<vmem>>, vector<8x32xf32>
    %5 = arith.index_cast %c0_i32_1 : i32 to index
    %c0_5 = arith.constant 0 : index
    %c0_6 = arith.constant 0 : index
    %6 = vector.load %arg1[%5, %c0_5, %c0_6] : memref<8x8x128xf32, #tpu.memory_space<vmem>>, vector<1x8x128xf32>
    %7 = vector.shape_cast %6 : vector<1x8x128xf32> to vector<8x128xf32>
    %8 = arith.truncf %3 : vector<8x32xf32> to vector<8x32xbf16>
    %c0_7 = arith.constant 0 : index
    %c0_8 = arith.constant 0 : index
    %9 = vector.load %arg4[%c0_7, %c0_8] : memref<32x128xbf16, #tpu.memory_space<vmem>>, vector<32x128xbf16>
    %cst = arith.constant dense<0.000000e+00> : vector<8x128xf32>
    %10 = tpu.matmul %8, %9, %cst {dimension_numbers = #tpu.dot_dimension_numbers<[1], [0], [0], [1], [0, 0, 1, 1], [], []>} : vector<8x32xbf16>, vector<32x128xbf16>, vector<8x128xf32> -> vector<8x128xf32>
    %11 = arith.addf %7, %10 : vector<8x128xf32>
    %12 = vector.extract_strided_slice %11 {offsets = [0, 0], sizes = [8, 32], strides = [1, 1]} : vector<8x128xf32> to vector<8x32xf32>
    %13 = arith.negf %12 : vector<8x32xf32>
    %14 = math.exp %13 : vector<8x32xf32>
    %cst_9 = arith.constant 1.000000e+00 : f32
    %15 = vector.broadcast %cst_9 : f32 to vector<8x32xf32>
    %16 = arith.addf %15, %14 : vector<8x32xf32>
    %17 = arith.divf %15, %16 : vector<8x32xf32>
    %18 = vector.extract_strided_slice %11 {offsets = [0, 32], sizes = [8, 32], strides = [1, 1]} : vector<8x128xf32> to vector<8x32xf32>
    %19 = arith.negf %18 : vector<8x32xf32>
    %20 = math.exp %19 : vector<8x32xf32>
    %cst_10 = arith.constant 1.000000e+00 : f32
    %21 = vector.broadcast %cst_10 : f32 to vector<8x32xf32>
    %22 = arith.addf %21, %20 : vector<8x32xf32>
    %23 = arith.divf %21, %22 : vector<8x32xf32>
    %24 = vector.extract_strided_slice %11 {offsets = [0, 64], sizes = [8, 32], strides = [1, 1]} : vector<8x128xf32> to vector<8x32xf32>
    %25 = math.tanh %24 : vector<8x32xf32>
    %26 = vector.extract_strided_slice %11 {offsets = [0, 96], sizes = [8, 32], strides = [1, 1]} : vector<8x128xf32> to vector<8x32xf32>
    %27 = arith.negf %26 : vector<8x32xf32>
    %28 = math.exp %27 : vector<8x32xf32>
    %cst_11 = arith.constant 1.000000e+00 : f32
    %29 = vector.broadcast %cst_11 : f32 to vector<8x32xf32>
    %30 = arith.addf %29, %28 : vector<8x32xf32>
    %31 = arith.divf %29, %30 : vector<8x32xf32>
    %32 = arith.mulf %23, %4 : vector<8x32xf32>
    %33 = arith.mulf %17, %25 : vector<8x32xf32>
    %34 = arith.addf %32, %33 : vector<8x32xf32>
    %35 = math.tanh %34 : vector<8x32xf32>
    %36 = arith.mulf %31, %35 : vector<8x32xf32>
    %c0_12 = arith.constant 0 : index
    %c0_13 = arith.constant 0 : index
    %37 = vector.load %arg8[%c0_12, %c0_13] : memref<8x32xf32, #tpu.memory_space<vmem>>, vector<8x32xf32>
    tpu.vector_store %arg8[%c0_12, %c0_13], %36 {strides = array<i32>} : memref<8x32xf32, #tpu.memory_space<vmem>>, vector<8x32xf32>,
    %c0_14 = arith.constant 0 : index
    %c0_15 = arith.constant 0 : index
    %38 = vector.load %arg9[%c0_14, %c0_15] : memref<8x32xf32, #tpu.memory_space<vmem>>, vector<8x32xf32>
    tpu.vector_store %arg9[%c0_14, %c0_15], %34 {strides = array<i32>} : memref<8x32xf32, #tpu.memory_space<vmem>>, vector<8x32xf32>,
    %39 = arith.truncf %36 : vector<8x32xf32> to vector<8x32xbf16>
    %40 = arith.index_cast %c0_i32_1 : i32 to index
    %c0_16 = arith.constant 0 : index
    %c0_17 = arith.constant 0 : index
    %41 = vector.load %arg5[%40, %c0_16, %c0_17] : memref<8x8x32xbf16, #tpu.memory_space<vmem>>, vector<1x8x32xbf16>
    %42 = vector.shape_cast %41 : vector<1x8x32xbf16> to vector<8x32xbf16>
    %43 = vector.shape_cast %39 : vector<8x32xbf16> to vector<1x8x32xbf16>
    tpu.vector_store %arg5[%40, %c0_16, %c0_17], %43 {strides = array<i32>} : memref<8x8x32xbf16, #tpu.memory_space<vmem>>, vector<1x8x32xbf16>,
    %c1_i32 = arith.constant 1 : i32
    %c0_18 = arith.constant 0 : index
    %c0_19 = arith.constant 0 : index
    %44 = vector.load %arg8[%c0_18, %c0_19] : memref<8x32xf32, #tpu.memory_space<vmem>>, vector<8x32xf32>
    %c0_20 = arith.constant 0 : index
    %c0_21 = arith.constant 0 : index
    %45 = vector.load %arg9[%c0_20, %c0_21] : memref<8x32xf32, #tpu.memory_space<vmem>>, vector<8x32xf32>
    %46 = arith.index_cast %c1_i32 : i32 to index
    %c0_22 = arith.constant 0 : index
    %c0_23 = arith.constant 0 : index
    %47 = vector.load %arg1[%46, %c0_22, %c0_23] : memref<8x8x128xf32, #tpu.memory_space<vmem>>, vector<1x8x128xf32>
    %48 = vector.shape_cast %47 : vector<1x8x128xf32> to vector<8x128xf32>
    %49 = arith.truncf %44 : vector<8x32xf32> to vector<8x32xbf16>
    %c0_24 = arith.constant 0 : index
    %c0_25 = arith.constant 0 : index
    %50 = vector.load %arg4[%c0_24, %c0_25] : memref<32x128xbf16, #tpu.memory_space<vmem>>, vector<32x128xbf16>
    %cst_26 = arith.constant dense<0.000000e+00> : vector<8x128xf32>
    %51 = tpu.matmul %49, %50, %cst_26 {dimension_numbers = #tpu.dot_dimension_numbers<[1], [0], [0], [1], [0, 0, 1, 1], [], []>} : vector<8x32xbf16>, vector<32x128xbf16>, vector<8x128xf32> -> vector<8x128xf32>
    %52 = arith.addf %48, %51 : vector<8x128xf32>
    %53 = vector.extract_strided_slice %52 {offsets = [0, 0], sizes = [8, 32], strides = [1, 1]} : vector<8x128xf32> to vector<8x32xf32>
    %54 = arith.negf %53 : vector<8x32xf32>
    %55 = math.exp %54 : vector<8x32xf32>
    %cst_27 = arith.constant 1.000000e+00 : f32
    %56 = vector.broadcast %cst_27 : f32 to vector<8x32xf32>
    %57 = arith.addf %56, %55 : vector<8x32xf32>
    %58 = arith.divf %56, %57 : vector<8x32xf32>
    %59 = vector.extract_strided_slice %52 {offsets = [0, 32], sizes = [8, 32], strides = [1, 1]} : vector<8x128xf32> to vector<8x32xf32>
    %60 = arith.negf %59 : vector<8x32xf32>
    %61 = math.exp %60 : vector<8x32xf32>
    %cst_28 = arith.constant 1.000000e+00 : f32
    %62 = vector.broadcast %cst_28 : f32 to vector<8x32xf32>
    %63 = arith.addf %62, %61 : vector<8x32xf32>
    %64 = arith.divf %62, %63 : vector<8x32xf32>
    %65 = vector.extract_strided_slice %52 {offsets = [0, 64], sizes = [8, 32], strides = [1, 1]} : vector<8x128xf32> to vector<8x32xf32>
    %66 = math.tanh %65 : vector<8x32xf32>
    %67 = vector.extract_strided_slice %52 {offsets = [0, 96], sizes = [8, 32], strides = [1, 1]} : vector<8x128xf32> to vector<8x32xf32>
    %68 = arith.negf %67 : vector<8x32xf32>
    %69 = math.exp %68 : vector<8x32xf32>
    %cst_29 = arith.constant 1.000000e+00 : f32
    %70 = vector.broadcast %cst_29 : f32 to vector<8x32xf32>
    %71 = arith.addf %70, %69 : vector<8x32xf32>
    %72 = arith.divf %70, %71 : vector<8x32xf32>
    %73 = arith.mulf %64, %45 : vector<8x32xf32>
    %74 = arith.mulf %58, %66 : vector<8x32xf32>
    %75 = arith.addf %73, %74 : vector<8x32xf32>
    %76 = math.tanh %75 : vector<8x32xf32>
    %77 = arith.mulf %72, %76 : vector<8x32xf32>
    %c0_30 = arith.constant 0 : index
    %c0_31 = arith.constant 0 : index
    %78 = vector.load %arg8[%c0_30, %c0_31] : memref<8x32xf32, #tpu.memory_space<vmem>>, vector<8x32xf32>
    tpu.vector_store %arg8[%c0_30, %c0_31], %77 {strides = array<i32>} : memref<8x32xf32, #tpu.memory_space<vmem>>, vector<8x32xf32>,
    %c0_32 = arith.constant 0 : index
    %c0_33 = arith.constant 0 : index
    %79 = vector.load %arg9[%c0_32, %c0_33] : memref<8x32xf32, #tpu.memory_space<vmem>>, vector<8x32xf32>
    tpu.vector_store %arg9[%c0_32, %c0_33], %75 {strides = array<i32>} : memref<8x32xf32, #tpu.memory_space<vmem>>, vector<8x32xf32>,
    %80 = arith.truncf %77 : vector<8x32xf32> to vector<8x32xbf16>
    %81 = arith.index_cast %c1_i32 : i32 to index
    %c0_34 = arith.constant 0 : index
    %c0_35 = arith.constant 0 : index
    %82 = vector.load %arg5[%81, %c0_34, %c0_35] : memref<8x8x32xbf16, #tpu.memory_space<vmem>>, vector<1x8x32xbf16>
    %83 = vector.shape_cast %82 : vector<1x8x32xbf16> to vector<8x32xbf16>
    %84 = vector.shape_cast %80 : vector<8x32xbf16> to vector<1x8x32xbf16>
    tpu.vector_store %arg5[%81, %c0_34, %c0_35], %84 {strides = array<i32>} : memref<8x8x32xbf16, #tpu.memory_space<vmem>>, vector<1x8x32xbf16>,
    %c2_i32 = arith.constant 2 : i32
    %c0_36 = arith.constant 0 : index
    %c0_37 = arith.constant 0 : index
    %85 = vector.load %arg8[%c0_36, %c0_37] : memref<8x32xf32, #tpu.memory_space<vmem>>, vector<8x32xf32>
    %c0_38 = arith.constant 0 : index
    %c0_39 = arith.constant 0 : index
    %86 = vector.load %arg9[%c0_38, %c0_39] : memref<8x32xf32, #tpu.memory_space<vmem>>, vector<8x32xf32>
    %87 = arith.index_cast %c2_i32 : i32 to index
    %c0_40 = arith.constant 0 : index
    %c0_41 = arith.constant 0 : index
    %88 = vector.load %arg1[%87, %c0_40, %c0_41] : memref<8x8x128xf32, #tpu.memory_space<vmem>>, vector<1x8x128xf32>
    %89 = vector.shape_cast %88 : vector<1x8x128xf32> to vector<8x128xf32>
    %90 = arith.truncf %85 : vector<8x32xf32> to vector<8x32xbf16>
    %c0_42 = arith.constant 0 : index
    %c0_43 = arith.constant 0 : index
    %91 = vector.load %arg4[%c0_42, %c0_43] : memref<32x128xbf16, #tpu.memory_space<vmem>>, vector<32x128xbf16>
    %cst_44 = arith.constant dense<0.000000e+00> : vector<8x128xf32>
    %92 = tpu.matmul %90, %91, %cst_44 {dimension_numbers = #tpu.dot_dimension_numbers<[1], [0], [0], [1], [0, 0, 1, 1], [], []>} : vector<8x32xbf16>, vector<32x128xbf16>, vector<8x128xf32> -> vector<8x128xf32>
    %93 = arith.addf %89, %92 : vector<8x128xf32>
    %94 = vector.extract_strided_slice %93 {offsets = [0, 0], sizes = [8, 32], strides = [1, 1]} : vector<8x128xf32> to vector<8x32xf32>
    %95 = arith.negf %94 : vector<8x32xf32>
    %96 = math.exp %95 : vector<8x32xf32>
    %cst_45 = arith.constant 1.000000e+00 : f32
    %97 = vector.broadcast %cst_45 : f32 to vector<8x32xf32>
    %98 = arith.addf %97, %96 : vector<8x32xf32>
    %99 = arith.divf %97, %98 : vector<8x32xf32>
    %100 = vector.extract_strided_slice %93 {offsets = [0, 32], sizes = [8, 32], strides = [1, 1]} : vector<8x128xf32> to vector<8x32xf32>
    %101 = arith.negf %100 : vector<8x32xf32>
    %102 = math.exp %101 : vector<8x32xf32>
    %cst_46 = arith.constant 1.000000e+00 : f32
    %103 = vector.broadcast %cst_46 : f32 to vector<8x32xf32>
    %104 = arith.addf %103, %102 : vector<8x32xf32>
    %105 = arith.divf %103, %104 : vector<8x32xf32>
    %106 = vector.extract_strided_slice %93 {offsets = [0, 64], sizes = [8, 32], strides = [1, 1]} : vector<8x128xf32> to vector<8x32xf32>
    %107 = math.tanh %106 : vector<8x32xf32>
    %108 = vector.extract_strided_slice %93 {offsets = [0, 96], sizes = [8, 32], strides = [1, 1]} : vector<8x128xf32> to vector<8x32xf32>
    %109 = arith.negf %108 : vector<8x32xf32>
    %110 = math.exp %109 : vector<8x32xf32>
    %cst_47 = arith.constant 1.000000e+00 : f32
    %111 = vector.broadcast %cst_47 : f32 to vector<8x32xf32>
    %112 = arith.addf %111, %110 : vector<8x32xf32>
    %113 = arith.divf %111, %112 : vector<8x32xf32>
    %114 = arith.mulf %105, %86 : vector<8x32xf32>
    %115 = arith.mulf %99, %107 : vector<8x32xf32>
    %116 = arith.addf %114, %115 : vector<8x32xf32>
    %117 = math.tanh %116 : vector<8x32xf32>
    %118 = arith.mulf %113, %117 : vector<8x32xf32>
    %c0_48 = arith.constant 0 : index
    %c0_49 = arith.constant 0 : index
    %119 = vector.load %arg8[%c0_48, %c0_49] : memref<8x32xf32, #tpu.memory_space<vmem>>, vector<8x32xf32>
    tpu.vector_store %arg8[%c0_48, %c0_49], %118 {strides = array<i32>} : memref<8x32xf32, #tpu.memory_space<vmem>>, vector<8x32xf32>,
    %c0_50 = arith.constant 0 : index
    %c0_51 = arith.constant 0 : index
    %120 = vector.load %arg9[%c0_50, %c0_51] : memref<8x32xf32, #tpu.memory_space<vmem>>, vector<8x32xf32>
    tpu.vector_store %arg9[%c0_50, %c0_51], %116 {strides = array<i32>} : memref<8x32xf32, #tpu.memory_space<vmem>>, vector<8x32xf32>,
    %121 = arith.truncf %118 : vector<8x32xf32> to vector<8x32xbf16>
    %122 = arith.index_cast %c2_i32 : i32 to index
    %c0_52 = arith.constant 0 : index
    %c0_53 = arith.constant 0 : index
    %123 = vector.load %arg5[%122, %c0_52, %c0_53] : memref<8x8x32xbf16, #tpu.memory_space<vmem>>, vector<1x8x32xbf16>
    %124 = vector.shape_cast %123 : vector<1x8x32xbf16> to vector<8x32xbf16>
    %125 = vector.shape_cast %121 : vector<8x32xbf16> to vector<1x8x32xbf16>
    tpu.vector_store %arg5[%122, %c0_52, %c0_53], %125 {strides = array<i32>} : memref<8x8x32xbf16, #tpu.memory_space<vmem>>, vector<1x8x32xbf16>,
    %c3_i32 = arith.constant 3 : i32
    %c0_54 = arith.constant 0 : index
    %c0_55 = arith.constant 0 : index
    %126 = vector.load %arg8[%c0_54, %c0_55] : memref<8x32xf32, #tpu.memory_space<vmem>>, vector<8x32xf32>
    %c0_56 = arith.constant 0 : index
    %c0_57 = arith.constant 0 : index
    %127 = vector.load %arg9[%c0_56, %c0_57] : memref<8x32xf32, #tpu.memory_space<vmem>>, vector<8x32xf32>
    %128 = arith.index_cast %c3_i32 : i32 to index
    %c0_58 = arith.constant 0 : index
    %c0_59 = arith.constant 0 : index
    %129 = vector.load %arg1[%128, %c0_58, %c0_59] : memref<8x8x128xf32, #tpu.memory_space<vmem>>, vector<1x8x128xf32>
    %130 = vector.shape_cast %129 : vector<1x8x128xf32> to vector<8x128xf32>
    %131 = arith.truncf %126 : vector<8x32xf32> to vector<8x32xbf16>
    %c0_60 = arith.constant 0 : index
    %c0_61 = arith.constant 0 : index
    %132 = vector.load %arg4[%c0_60, %c0_61] : memref<32x128xbf16, #tpu.memory_space<vmem>>, vector<32x128xbf16>
    %cst_62 = arith.constant dense<0.000000e+00> : vector<8x128xf32>
    %133 = tpu.matmul %131, %132, %cst_62 {dimension_numbers = #tpu.dot_dimension_numbers<[1], [0], [0], [1], [0, 0, 1, 1], [], []>} : vector<8x32xbf16>, vector<32x128xbf16>, vector<8x128xf32> -> vector<8x128xf32>
    %134 = arith.addf %130, %133 : vector<8x128xf32>
    %135 = vector.extract_strided_slice %134 {offsets = [0, 0], sizes = [8, 32], strides = [1, 1]} : vector<8x128xf32> to vector<8x32xf32>
    %136 = arith.negf %135 : vector<8x32xf32>
    %137 = math.exp %136 : vector<8x32xf32>
    %cst_63 = arith.constant 1.000000e+00 : f32
    %138 = vector.broadcast %cst_63 : f32 to vector<8x32xf32>
    %139 = arith.addf %138, %137 : vector<8x32xf32>
    %140 = arith.divf %138, %139 : vector<8x32xf32>
    %141 = vector.extract_strided_slice %134 {offsets = [0, 32], sizes = [8, 32], strides = [1, 1]} : vector<8x128xf32> to vector<8x32xf32>
    %142 = arith.negf %141 : vector<8x32xf32>
    %143 = math.exp %142 : vector<8x32xf32>
    %cst_64 = arith.constant 1.000000e+00 : f32
    %144 = vector.broadcast %cst_64 : f32 to vector<8x32xf32>
    %145 = arith.addf %144, %143 : vector<8x32xf32>
    %146 = arith.divf %144, %145 : vector<8x32xf32>
    %147 = vector.extract_strided_slice %134 {offsets = [0, 64], sizes = [8, 32], strides = [1, 1]} : vector<8x128xf32> to vector<8x32xf32>
    %148 = math.tanh %147 : vector<8x32xf32>
    %149 = vector.extract_strided_slice %134 {offsets = [0, 96], sizes = [8, 32], strides = [1, 1]} : vector<8x128xf32> to vector<8x32xf32>
    %150 = arith.negf %149 : vector<8x32xf32>
    %151 = math.exp %150 : vector<8x32xf32>
    %cst_65 = arith.constant 1.000000e+00 : f32
    %152 = vector.broadcast %cst_65 : f32 to vector<8x32xf32>
    %153 = arith.addf %152, %151 : vector<8x32xf32>
    %154 = arith.divf %152, %153 : vector<8x32xf32>
    %155 = arith.mulf %146, %127 : vector<8x32xf32>
    %156 = arith.mulf %140, %148 : vector<8x32xf32>
    %157 = arith.addf %155, %156 : vector<8x32xf32>
    %158 = math.tanh %157 : vector<8x32xf32>
    %159 = arith.mulf %154, %158 : vector<8x32xf32>
    %c0_66 = arith.constant 0 : index
    %c0_67 = arith.constant 0 : index
    %160 = vector.load %arg8[%c0_66, %c0_67] : memref<8x32xf32, #tpu.memory_space<vmem>>, vector<8x32xf32>
    tpu.vector_store %arg8[%c0_66, %c0_67], %159 {strides = array<i32>} : memref<8x32xf32, #tpu.memory_space<vmem>>, vector<8x32xf32>,
    %c0_68 = arith.constant 0 : index
    %c0_69 = arith.constant 0 : index
    %161 = vector.load %arg9[%c0_68, %c0_69] : memref<8x32xf32, #tpu.memory_space<vmem>>, vector<8x32xf32>
    tpu.vector_store %arg9[%c0_68, %c0_69], %157 {strides = array<i32>} : memref<8x32xf32, #tpu.memory_space<vmem>>, vector<8x32xf32>,
    %162 = arith.truncf %159 : vector<8x32xf32> to vector<8x32xbf16>
    %163 = arith.index_cast %c3_i32 : i32 to index
    %c0_70 = arith.constant 0 : index
    %c0_71 = arith.constant 0 : index
    %164 = vector.load %arg5[%163, %c0_70, %c0_71] : memref<8x8x32xbf16, #tpu.memory_space<vmem>>, vector<1x8x32xbf16>
    %165 = vector.shape_cast %164 : vector<1x8x32xbf16> to vector<8x32xbf16>
    %166 = vector.shape_cast %162 : vector<8x32xbf16> to vector<1x8x32xbf16>
    tpu.vector_store %arg5[%163, %c0_70, %c0_71], %166 {strides = array<i32>} : memref<8x8x32xbf16, #tpu.memory_space<vmem>>, vector<1x8x32xbf16>,
    %c4_i32 = arith.constant 4 : i32
    %c0_72 = arith.constant 0 : index
    %c0_73 = arith.constant 0 : index
    %167 = vector.load %arg8[%c0_72, %c0_73] : memref<8x32xf32, #tpu.memory_space<vmem>>, vector<8x32xf32>
    %c0_74 = arith.constant 0 : index
    %c0_75 = arith.constant 0 : index
    %168 = vector.load %arg9[%c0_74, %c0_75] : memref<8x32xf32, #tpu.memory_space<vmem>>, vector<8x32xf32>
    %169 = arith.index_cast %c4_i32 : i32 to index
    %c0_76 = arith.constant 0 : index
    %c0_77 = arith.constant 0 : index
    %170 = vector.load %arg1[%169, %c0_76, %c0_77] : memref<8x8x128xf32, #tpu.memory_space<vmem>>, vector<1x8x128xf32>
    %171 = vector.shape_cast %170 : vector<1x8x128xf32> to vector<8x128xf32>
    %172 = arith.truncf %167 : vector<8x32xf32> to vector<8x32xbf16>
    %c0_78 = arith.constant 0 : index
    %c0_79 = arith.constant 0 : index
    %173 = vector.load %arg4[%c0_78, %c0_79] : memref<32x128xbf16, #tpu.memory_space<vmem>>, vector<32x128xbf16>
    %cst_80 = arith.constant dense<0.000000e+00> : vector<8x128xf32>
    %174 = tpu.matmul %172, %173, %cst_80 {dimension_numbers = #tpu.dot_dimension_numbers<[1], [0], [0], [1], [0, 0, 1, 1], [], []>} : vector<8x32xbf16>, vector<32x128xbf16>, vector<8x128xf32> -> vector<8x128xf32>
    %175 = arith.addf %171, %174 : vector<8x128xf32>
    %176 = vector.extract_strided_slice %175 {offsets = [0, 0], sizes = [8, 32], strides = [1, 1]} : vector<8x128xf32> to vector<8x32xf32>
    %177 = arith.negf %176 : vector<8x32xf32>
    %178 = math.exp %177 : vector<8x32xf32>
    %cst_81 = arith.constant 1.000000e+00 : f32
    %179 = vector.broadcast %cst_81 : f32 to vector<8x32xf32>
    %180 = arith.addf %179, %178 : vector<8x32xf32>
    %181 = arith.divf %179, %180 : vector<8x32xf32>
    %182 = vector.extract_strided_slice %175 {offsets = [0, 32], sizes = [8, 32], strides = [1, 1]} : vector<8x128xf32> to vector<8x32xf32>
    %183 = arith.negf %182 : vector<8x32xf32>
    %184 = math.exp %183 : vector<8x32xf32>
    %cst_82 = arith.constant 1.000000e+00 : f32
    %185 = vector.broadcast %cst_82 : f32 to vector<8x32xf32>
    %186 = arith.addf %185, %184 : vector<8x32xf32>
    %187 = arith.divf %185, %186 : vector<8x32xf32>
    %188 = vector.extract_strided_slice %175 {offsets = [0, 64], sizes = [8, 32], strides = [1, 1]} : vector<8x128xf32> to vector<8x32xf32>
    %189 = math.tanh %188 : vector<8x32xf32>
    %190 = vector.extract_strided_slice %175 {offsets = [0, 96], sizes = [8, 32], strides = [1, 1]} : vector<8x128xf32> to vector<8x32xf32>
    %191 = arith.negf %190 : vector<8x32xf32>
    %192 = math.exp %191 : vector<8x32xf32>
    %cst_83 = arith.constant 1.000000e+00 : f32
    %193 = vector.broadcast %cst_83 : f32 to vector<8x32xf32>
    %194 = arith.addf %193, %192 : vector<8x32xf32>
    %195 = arith.divf %193, %194 : vector<8x32xf32>
    %196 = arith.mulf %187, %168 : vector<8x32xf32>
    %197 = arith.mulf %181, %189 : vector<8x32xf32>
    %198 = arith.addf %196, %197 : vector<8x32xf32>
    %199 = math.tanh %198 : vector<8x32xf32>
    %200 = arith.mulf %195, %199 : vector<8x32xf32>
    %c0_84 = arith.constant 0 : index
    %c0_85 = arith.constant 0 : index
    %201 = vector.load %arg8[%c0_84, %c0_85] : memref<8x32xf32, #tpu.memory_space<vmem>>, vector<8x32xf32>
    tpu.vector_store %arg8[%c0_84, %c0_85], %200 {strides = array<i32>} : memref<8x32xf32, #tpu.memory_space<vmem>>, vector<8x32xf32>,
    %c0_86 = arith.constant 0 : index
    %c0_87 = arith.constant 0 : index
    %202 = vector.load %arg9[%c0_86, %c0_87] : memref<8x32xf32, #tpu.memory_space<vmem>>, vector<8x32xf32>
    tpu.vector_store %arg9[%c0_86, %c0_87], %198 {strides = array<i32>} : memref<8x32xf32, #tpu.memory_space<vmem>>, vector<8x32xf32>,
    %203 = arith.truncf %200 : vector<8x32xf32> to vector<8x32xbf16>
    %204 = arith.index_cast %c4_i32 : i32 to index
    %c0_88 = arith.constant 0 : index
    %c0_89 = arith.constant 0 : index
    %205 = vector.load %arg5[%204, %c0_88, %c0_89] : memref<8x8x32xbf16, #tpu.memory_space<vmem>>, vector<1x8x32xbf16>
    %206 = vector.shape_cast %205 : vector<1x8x32xbf16> to vector<8x32xbf16>
    %207 = vector.shape_cast %203 : vector<8x32xbf16> to vector<1x8x32xbf16>
    tpu.vector_store %arg5[%204, %c0_88, %c0_89], %207 {strides = array<i32>} : memref<8x8x32xbf16, #tpu.memory_space<vmem>>, vector<1x8x32xbf16>,
    %c5_i32 = arith.constant 5 : i32
    %c0_90 = arith.constant 0 : index
    %c0_91 = arith.constant 0 : index
    %208 = vector.load %arg8[%c0_90, %c0_91] : memref<8x32xf32, #tpu.memory_space<vmem>>, vector<8x32xf32>
    %c0_92 = arith.constant 0 : index
    %c0_93 = arith.constant 0 : index
    %209 = vector.load %arg9[%c0_92, %c0_93] : memref<8x32xf32, #tpu.memory_space<vmem>>, vector<8x32xf32>
    %210 = arith.index_cast %c5_i32 : i32 to index
    %c0_94 = arith.constant 0 : index
    %c0_95 = arith.constant 0 : index
    %211 = vector.load %arg1[%210, %c0_94, %c0_95] : memref<8x8x128xf32, #tpu.memory_space<vmem>>, vector<1x8x128xf32>
    %212 = vector.shape_cast %211 : vector<1x8x128xf32> to vector<8x128xf32>
    %213 = arith.truncf %208 : vector<8x32xf32> to vector<8x32xbf16>
    %c0_96 = arith.constant 0 : index
    %c0_97 = arith.constant 0 : index
    %214 = vector.load %arg4[%c0_96, %c0_97] : memref<32x128xbf16, #tpu.memory_space<vmem>>, vector<32x128xbf16>
    %cst_98 = arith.constant dense<0.000000e+00> : vector<8x128xf32>
    %215 = tpu.matmul %213, %214, %cst_98 {dimension_numbers = #tpu.dot_dimension_numbers<[1], [0], [0], [1], [0, 0, 1, 1], [], []>} : vector<8x32xbf16>, vector<32x128xbf16>, vector<8x128xf32> -> vector<8x128xf32>
    %216 = arith.addf %212, %215 : vector<8x128xf32>
    %217 = vector.extract_strided_slice %216 {offsets = [0, 0], sizes = [8, 32], strides = [1, 1]} : vector<8x128xf32> to vector<8x32xf32>
    %218 = arith.negf %217 : vector<8x32xf32>
    %219 = math.exp %218 : vector<8x32xf32>
    %cst_99 = arith.constant 1.000000e+00 : f32
    %220 = vector.broadcast %cst_99 : f32 to vector<8x32xf32>
    %221 = arith.addf %220, %219 : vector<8x32xf32>
    %222 = arith.divf %220, %221 : vector<8x32xf32>
    %223 = vector.extract_strided_slice %216 {offsets = [0, 32], sizes = [8, 32], strides = [1, 1]} : vector<8x128xf32> to vector<8x32xf32>
    %224 = arith.negf %223 : vector<8x32xf32>
    %225 = math.exp %224 : vector<8x32xf32>
    %cst_100 = arith.constant 1.000000e+00 : f32
    %226 = vector.broadcast %cst_100 : f32 to vector<8x32xf32>
    %227 = arith.addf %226, %225 : vector<8x32xf32>
    %228 = arith.divf %226, %227 : vector<8x32xf32>
    %229 = vector.extract_strided_slice %216 {offsets = [0, 64], sizes = [8, 32], strides = [1, 1]} : vector<8x128xf32> to vector<8x32xf32>
    %230 = math.tanh %229 : vector<8x32xf32>
    %231 = vector.extract_strided_slice %216 {offsets = [0, 96], sizes = [8, 32], strides = [1, 1]} : vector<8x128xf32> to vector<8x32xf32>
    %232 = arith.negf %231 : vector<8x32xf32>
    %233 = math.exp %232 : vector<8x32xf32>
    %cst_101 = arith.constant 1.000000e+00 : f32
    %234 = vector.broadcast %cst_101 : f32 to vector<8x32xf32>
    %235 = arith.addf %234, %233 : vector<8x32xf32>
    %236 = arith.divf %234, %235 : vector<8x32xf32>
    %237 = arith.mulf %228, %209 : vector<8x32xf32>
    %238 = arith.mulf %222, %230 : vector<8x32xf32>
    %239 = arith.addf %237, %238 : vector<8x32xf32>
    %240 = math.tanh %239 : vector<8x32xf32>
    %241 = arith.mulf %236, %240 : vector<8x32xf32>
    %c0_102 = arith.constant 0 : index
    %c0_103 = arith.constant 0 : index
    %242 = vector.load %arg8[%c0_102, %c0_103] : memref<8x32xf32, #tpu.memory_space<vmem>>, vector<8x32xf32>
    tpu.vector_store %arg8[%c0_102, %c0_103], %241 {strides = array<i32>} : memref<8x32xf32, #tpu.memory_space<vmem>>, vector<8x32xf32>,
    %c0_104 = arith.constant 0 : index
    %c0_105 = arith.constant 0 : index
    %243 = vector.load %arg9[%c0_104, %c0_105] : memref<8x32xf32, #tpu.memory_space<vmem>>, vector<8x32xf32>
    tpu.vector_store %arg9[%c0_104, %c0_105], %239 {strides = array<i32>} : memref<8x32xf32, #tpu.memory_space<vmem>>, vector<8x32xf32>,
    %244 = arith.truncf %241 : vector<8x32xf32> to vector<8x32xbf16>
    %245 = arith.index_cast %c5_i32 : i32 to index
    %c0_106 = arith.constant 0 : index
    %c0_107 = arith.constant 0 : index
    %246 = vector.load %arg5[%245, %c0_106, %c0_107] : memref<8x8x32xbf16, #tpu.memory_space<vmem>>, vector<1x8x32xbf16>
    %247 = vector.shape_cast %246 : vector<1x8x32xbf16> to vector<8x32xbf16>
    %248 = vector.shape_cast %244 : vector<8x32xbf16> to vector<1x8x32xbf16>
    tpu.vector_store %arg5[%245, %c0_106, %c0_107], %248 {strides = array<i32>} : memref<8x8x32xbf16, #tpu.memory_space<vmem>>, vector<1x8x32xbf16>,
    %c6_i32 = arith.constant 6 : i32
    %c0_108 = arith.constant 0 : index
    %c0_109 = arith.constant 0 : index
    %249 = vector.load %arg8[%c0_108, %c0_109] : memref<8x32xf32, #tpu.memory_space<vmem>>, vector<8x32xf32>
    %c0_110 = arith.constant 0 : index
    %c0_111 = arith.constant 0 : index
    %250 = vector.load %arg9[%c0_110, %c0_111] : memref<8x32xf32, #tpu.memory_space<vmem>>, vector<8x32xf32>
    %251 = arith.index_cast %c6_i32 : i32 to index
    %c0_112 = arith.constant 0 : index
    %c0_113 = arith.constant 0 : index
    %252 = vector.load %arg1[%251, %c0_112, %c0_113] : memref<8x8x128xf32, #tpu.memory_space<vmem>>, vector<1x8x128xf32>
    %253 = vector.shape_cast %252 : vector<1x8x128xf32> to vector<8x128xf32>
    %254 = arith.truncf %249 : vector<8x32xf32> to vector<8x32xbf16>
    %c0_114 = arith.constant 0 : index
    %c0_115 = arith.constant 0 : index
    %255 = vector.load %arg4[%c0_114, %c0_115] : memref<32x128xbf16, #tpu.memory_space<vmem>>, vector<32x128xbf16>
    %cst_116 = arith.constant dense<0.000000e+00> : vector<8x128xf32>
    %256 = tpu.matmul %254, %255, %cst_116 {dimension_numbers = #tpu.dot_dimension_numbers<[1], [0], [0], [1], [0, 0, 1, 1], [], []>} : vector<8x32xbf16>, vector<32x128xbf16>, vector<8x128xf32> -> vector<8x128xf32>
    %257 = arith.addf %253, %256 : vector<8x128xf32>
    %258 = vector.extract_strided_slice %257 {offsets = [0, 0], sizes = [8, 32], strides = [1, 1]} : vector<8x128xf32> to vector<8x32xf32>
    %259 = arith.negf %258 : vector<8x32xf32>
    %260 = math.exp %259 : vector<8x32xf32>
    %cst_117 = arith.constant 1.000000e+00 : f32
    %261 = vector.broadcast %cst_117 : f32 to vector<8x32xf32>
    %262 = arith.addf %261, %260 : vector<8x32xf32>
    %263 = arith.divf %261, %262 : vector<8x32xf32>
    %264 = vector.extract_strided_slice %257 {offsets = [0, 32], sizes = [8, 32], strides = [1, 1]} : vector<8x128xf32> to vector<8x32xf32>
    %265 = arith.negf %264 : vector<8x32xf32>
    %266 = math.exp %265 : vector<8x32xf32>
    %cst_118 = arith.constant 1.000000e+00 : f32
    %267 = vector.broadcast %cst_118 : f32 to vector<8x32xf32>
    %268 = arith.addf %267, %266 : vector<8x32xf32>
    %269 = arith.divf %267, %268 : vector<8x32xf32>
    %270 = vector.extract_strided_slice %257 {offsets = [0, 64], sizes = [8, 32], strides = [1, 1]} : vector<8x128xf32> to vector<8x32xf32>
    %271 = math.tanh %270 : vector<8x32xf32>
    %272 = vector.extract_strided_slice %257 {offsets = [0, 96], sizes = [8, 32], strides = [1, 1]} : vector<8x128xf32> to vector<8x32xf32>
    %273 = arith.negf %272 : vector<8x32xf32>
    %274 = math.exp %273 : vector<8x32xf32>
    %cst_119 = arith.constant 1.000000e+00 : f32
    %275 = vector.broadcast %cst_119 : f32 to vector<8x32xf32>
    %276 = arith.addf %275, %274 : vector<8x32xf32>
    %277 = arith.divf %275, %276 : vector<8x32xf32>
    %278 = arith.mulf %269, %250 : vector<8x32xf32>
    %279 = arith.mulf %263, %271 : vector<8x32xf32>
    %280 = arith.addf %278, %279 : vector<8x32xf32>
    %281 = math.tanh %280 : vector<8x32xf32>
    %282 = arith.mulf %277, %281 : vector<8x32xf32>
    %c0_120 = arith.constant 0 : index
    %c0_121 = arith.constant 0 : index
    %283 = vector.load %arg8[%c0_120, %c0_121] : memref<8x32xf32, #tpu.memory_space<vmem>>, vector<8x32xf32>
    tpu.vector_store %arg8[%c0_120, %c0_121], %282 {strides = array<i32>} : memref<8x32xf32, #tpu.memory_space<vmem>>, vector<8x32xf32>,
    %c0_122 = arith.constant 0 : index
    %c0_123 = arith.constant 0 : index
    %284 = vector.load %arg9[%c0_122, %c0_123] : memref<8x32xf32, #tpu.memory_space<vmem>>, vector<8x32xf32>
    tpu.vector_store %arg9[%c0_122, %c0_123], %280 {strides = array<i32>} : memref<8x32xf32, #tpu.memory_space<vmem>>, vector<8x32xf32>,
    %285 = arith.truncf %282 : vector<8x32xf32> to vector<8x32xbf16>
    %286 = arith.index_cast %c6_i32 : i32 to index
    %c0_124 = arith.constant 0 : index
    %c0_125 = arith.constant 0 : index
    %287 = vector.load %arg5[%286, %c0_124, %c0_125] : memref<8x8x32xbf16, #tpu.memory_space<vmem>>, vector<1x8x32xbf16>
    %288 = vector.shape_cast %287 : vector<1x8x32xbf16> to vector<8x32xbf16>
    %289 = vector.shape_cast %285 : vector<8x32xbf16> to vector<1x8x32xbf16>
    tpu.vector_store %arg5[%286, %c0_124, %c0_125], %289 {strides = array<i32>} : memref<8x8x32xbf16, #tpu.memory_space<vmem>>, vector<1x8x32xbf16>,
    %c7_i32 = arith.constant 7 : i32
    %c0_126 = arith.constant 0 : index
    %c0_127 = arith.constant 0 : index
    %290 = vector.load %arg8[%c0_126, %c0_127] : memref<8x32xf32, #tpu.memory_space<vmem>>, vector<8x32xf32>
    %c0_128 = arith.constant 0 : index
    %c0_129 = arith.constant 0 : index
    %291 = vector.load %arg9[%c0_128, %c0_129] : memref<8x32xf32, #tpu.memory_space<vmem>>, vector<8x32xf32>
    %292 = arith.index_cast %c7_i32 : i32 to index
    %c0_130 = arith.constant 0 : index
    %c0_131 = arith.constant 0 : index
    %293 = vector.load %arg1[%292, %c0_130, %c0_131] : memref<8x8x128xf32, #tpu.memory_space<vmem>>, vector<1x8x128xf32>
    %294 = vector.shape_cast %293 : vector<1x8x128xf32> to vector<8x128xf32>
    %295 = arith.truncf %290 : vector<8x32xf32> to vector<8x32xbf16>
    %c0_132 = arith.constant 0 : index
    %c0_133 = arith.constant 0 : index
    %296 = vector.load %arg4[%c0_132, %c0_133] : memref<32x128xbf16, #tpu.memory_space<vmem>>, vector<32x128xbf16>
    %cst_134 = arith.constant dense<0.000000e+00> : vector<8x128xf32>
    %297 = tpu.matmul %295, %296, %cst_134 {dimension_numbers = #tpu.dot_dimension_numbers<[1], [0], [0], [1], [0, 0, 1, 1], [], []>} : vector<8x32xbf16>, vector<32x128xbf16>, vector<8x128xf32> -> vector<8x128xf32>
    %298 = arith.addf %294, %297 : vector<8x128xf32>
    %299 = vector.extract_strided_slice %298 {offsets = [0, 0], sizes = [8, 32], strides = [1, 1]} : vector<8x128xf32> to vector<8x32xf32>
    %300 = arith.negf %299 : vector<8x32xf32>
    %301 = math.exp %300 : vector<8x32xf32>
    %cst_135 = arith.constant 1.000000e+00 : f32
    %302 = vector.broadcast %cst_135 : f32 to vector<8x32xf32>
    %303 = arith.addf %302, %301 : vector<8x32xf32>
    %304 = arith.divf %302, %303 : vector<8x32xf32>
    %305 = vector.extract_strided_slice %298 {offsets = [0, 32], sizes = [8, 32], strides = [1, 1]} : vector<8x128xf32> to vector<8x32xf32>
    %306 = arith.negf %305 : vector<8x32xf32>
    %307 = math.exp %306 : vector<8x32xf32>
    %cst_136 = arith.constant 1.000000e+00 : f32
    %308 = vector.broadcast %cst_136 : f32 to vector<8x32xf32>
    %309 = arith.addf %308, %307 : vector<8x32xf32>
    %310 = arith.divf %308, %309 : vector<8x32xf32>
    %311 = vector.extract_strided_slice %298 {offsets = [0, 64], sizes = [8, 32], strides = [1, 1]} : vector<8x128xf32> to vector<8x32xf32>
    %312 = math.tanh %311 : vector<8x32xf32>
    %313 = vector.extract_strided_slice %298 {offsets = [0, 96], sizes = [8, 32], strides = [1, 1]} : vector<8x128xf32> to vector<8x32xf32>
    %314 = arith.negf %313 : vector<8x32xf32>
    %315 = math.exp %314 : vector<8x32xf32>
    %cst_137 = arith.constant 1.000000e+00 : f32
    %316 = vector.broadcast %cst_137 : f32 to vector<8x32xf32>
    %317 = arith.addf %316, %315 : vector<8x32xf32>
    %318 = arith.divf %316, %317 : vector<8x32xf32>
    %319 = arith.mulf %310, %291 : vector<8x32xf32>
    %320 = arith.mulf %304, %312 : vector<8x32xf32>
    %321 = arith.addf %319, %320 : vector<8x32xf32>
    %322 = math.tanh %321 : vector<8x32xf32>
    %323 = arith.mulf %318, %322 : vector<8x32xf32>
    %c0_138 = arith.constant 0 : index
    %c0_139 = arith.constant 0 : index
    %324 = vector.load %arg8[%c0_138, %c0_139] : memref<8x32xf32, #tpu.memory_space<vmem>>, vector<8x32xf32>
    tpu.vector_store %arg8[%c0_138, %c0_139], %323 {strides = array<i32>} : memref<8x32xf32, #tpu.memory_space<vmem>>, vector<8x32xf32>,
    %c0_140 = arith.constant 0 : index
    %c0_141 = arith.constant 0 : index
    %325 = vector.load %arg9[%c0_140, %c0_141] : memref<8x32xf32, #tpu.memory_space<vmem>>, vector<8x32xf32>
    tpu.vector_store %arg9[%c0_140, %c0_141], %321 {strides = array<i32>} : memref<8x32xf32, #tpu.memory_space<vmem>>, vector<8x32xf32>,
    %326 = arith.truncf %323 : vector<8x32xf32> to vector<8x32xbf16>
    %327 = arith.index_cast %c7_i32 : i32 to index
    %c0_142 = arith.constant 0 : index
    %c0_143 = arith.constant 0 : index
    %328 = vector.load %arg5[%327, %c0_142, %c0_143] : memref<8x8x32xbf16, #tpu.memory_space<vmem>>, vector<1x8x32xbf16>
    %329 = vector.shape_cast %328 : vector<1x8x32xbf16> to vector<8x32xbf16>
    %330 = vector.shape_cast %326 : vector<8x32xbf16> to vector<1x8x32xbf16>
    tpu.vector_store %arg5[%327, %c0_142, %c0_143], %330 {strides = array<i32>} : memref<8x8x32xbf16, #tpu.memory_space<vmem>>, vector<1x8x32xbf16>,
    %c8_i32 = arith.constant 8 : i32
    %c0_144 = arith.constant 0 : index
    %c0_145 = arith.constant 0 : index
    %331 = vector.load %arg8[%c0_144, %c0_145] : memref<8x32xf32, #tpu.memory_space<vmem>>, vector<8x32xf32>
    %c0_146 = arith.constant 0 : index
    %c0_147 = arith.constant 0 : index
    %332 = vector.load %arg6[%c0_146, %c0_147] : memref<8x32xf32, #tpu.memory_space<vmem>>, vector<8x32xf32>
    tpu.vector_store %arg6[%c0_146, %c0_147], %331 {strides = array<i32>} : memref<8x32xf32, #tpu.memory_space<vmem>>, vector<8x32xf32>,
    %c0_148 = arith.constant 0 : index
    %c0_149 = arith.constant 0 : index
    %333 = vector.load %arg9[%c0_148, %c0_149] : memref<8x32xf32, #tpu.memory_space<vmem>>, vector<8x32xf32>
    %c0_150 = arith.constant 0 : index
    %c0_151 = arith.constant 0 : index
    %334 = vector.load %arg7[%c0_150, %c0_151] : memref<8x32xf32, #tpu.memory_space<vmem>>, vector<8x32xf32>
    tpu.vector_store %arg7[%c0_150, %c0_151], %333 {strides = array<i32>} : memref<8x32xf32, #tpu.memory_space<vmem>>, vector<8x32xf32>,
    return
  }
  func.func @transform_0(%arg0: i32) -> (i32, i32, i32) {
    %c0_i32 = arith.constant 0 : i32
    %c0_i32_0 = arith.constant 0 : i32
    %c0_i32_1 = arith.constant 0 : i32
    return %arg0, %c0_i32, %c0_i32_0 : i32, i32, i32
  }
  func.func @transform_1(%arg0: i32) -> (i32, i32) {
    %c0_i32 = arith.constant 0 : i32
    %c0_i32_0 = arith.constant 0 : i32
    %c0_i32_1 = arith.constant 0 : i32
    return %c0_i32, %c0_i32_0 : i32, i32
  }
  func.func @transform_2(%arg0: i32) -> (i32, i32) {
    %c0_i32 = arith.constant 0 : i32
    %c0_i32_0 = arith.constant 0 : i32
    %c0_i32_1 = arith.constant 0 : i32
    return %c0_i32, %c0_i32_0 : i32, i32
  }
  func.func @transform_3(%arg0: i32) -> (i32, i32) {
    %c0_i32 = arith.constant 0 : i32
    %c0_i32_0 = arith.constant 0 : i32
    %c0_i32_1 = arith.constant 0 : i32
    return %c0_i32, %c0_i32_0 : i32, i32
  }
  func.func @transform_4(%arg0: i32) -> (i32, i32, i32) {
    %c0_i32 = arith.constant 0 : i32
    %c0_i32_0 = arith.constant 0 : i32
    %c0_i32_1 = arith.constant 0 : i32
    return %arg0, %c0_i32, %c0_i32_0 : i32, i32, i32
  }
  func.func @transform_5(%arg0: i32) -> (i32, i32) {
    %c0_i32 = arith.constant 0 : i32
    %c0_i32_0 = arith.constant 0 : i32
    %c0_i32_1 = arith.constant 0 : i32
    return %c0_i32, %c0_i32_0 : i32, i32
  }
  func.func @transform_6(%arg0: i32) -> (i32, i32) {
    %c0_i32 = arith.constant 0 : i32
    %c0_i32_0 = arith.constant 0 : i32
    %c0_i32_1 = arith.constant 0 : i32
    return %c0_i32, %c0_i32_0 : i32, i32
  }
}

</mosaic_0001>

<llo_original>
// kernel: lstm_generator_forward.5
$region0: #{lstm_generator_forward.5}
  #allocation0 [shape = 'u32[]', space=smem, size = 0x4, offset = 0x4, fixed_abs, tag = 'smem constant byte address 0x4 - core index']
  #allocation1 [shape = 'u32[144,128]{1,0:T(1,128)}', space=vmem, size = 0x12000, scoped, tag = 'internal scratch']
  %s0 = inlined_call_operand.vmem [shape: bf16[64,16], index: 0, kind: input, shape index: {}]
  %s1 = inlined_call_operand.vmem [shape: bf16[16,128], index: 1, kind: input, shape index: {}]
  %s2 = inlined_call_operand.vmem [shape: f32[1,128], index: 2, kind: input, shape index: {}]
  %s3 = inlined_call_operand.vmem [shape: f32[64,128], index: 3, kind: output, shape index: {}]
  %s4 = sld [smem:[#allocation0]]
  $region22: #{lstm_generator_forward.5} parent=0
    _
  %s6 = ssub.s32 1, %s4
  %s7 = scalar_select 0, %s6, %s4
  // Predicated region
  $region2: #{lstm_generator_forward.5} parent=0 // pred_check
    _
  $region3: #{lstm_generator_forward.5} parent=0 // pred_check_branch
    %9 = sbr.rel (0) target = $region5
  $region4: #{lstm_generator_forward.5} parent=0 // pred_region
    _
  $region5: #{lstm_generator_forward.5} parent=0 // pred_fallthru
    _
  // Predicated region
  $region6: #{lstm_generator_forward.5} parent=0 // pred_check
    _
  $region7: #{lstm_generator_forward.5} parent=0 // pred_check_branch
    %11 = sbr.rel (0) target = $region9
  $region8: #{lstm_generator_forward.5} parent=0 // pred_region
    _
  $region9: #{lstm_generator_forward.5} parent=0 // pred_fallthru
    _
  // Predicated region
  $region10: #{lstm_generator_forward.5} parent=0 // pred_check
    _
  $region11: #{lstm_generator_forward.5} parent=0 // pred_check_branch
    %13 = sbr.rel (0) target = $region13
  $region12: #{lstm_generator_forward.5} parent=0 // pred_region
    _
  $region13: #{lstm_generator_forward.5} parent=0 // pred_fallthru
    _
  %v15 = vld [vmem:[%s0] sm:$0xf]
  %v16 = vld [vmem:[%s0 + $0x4] sm:$0xf]
  %v17 = vld [vmem:[%s0 + $0x8] sm:$0xf]
  %v18 = vld [vmem:[%s0 + $0xc] sm:$0xf]
  %v19 = vld [vmem:[%s0 + $0x10] sm:$0xf]
  %v20 = vld [vmem:[%s0 + $0x14] sm:$0xf]
  %v21 = vld [vmem:[%s0 + $0x18] sm:$0xf]
  %v22 = vld [vmem:[%s0 + $0x1c] sm:$0xf]
  %v23 = vld [vmem:[%s1] sm:$0xf]
  %v24 = vld [vmem:[%s1 + $0x4] sm:$0xf]
  %v25 = vld [vmem:[%s2] sm:$0x1]
  %v27 = vlaneseq
  %v28 = vshrl.u32 %v27, 7
  %v29 = vsub.s32 0, %v28
  %v30 = vrot.slane %v25, %v29
  %v40 = vunpack.c.l.b16 %v15
  %v41 = vunpack.c.l.b16 %v16
  %v42 = vunpack.c.l.b16 %v17
  %v43 = vunpack.c.l.b16 %v18
  %v44 = vunpack.c.l.b16 %v19
  %v45 = vunpack.c.l.b16 %v20
  %v46 = vunpack.c.l.b16 %v21
  %v47 = vunpack.c.l.b16 %v22
  %v48 = vpack.c.b16 %v41, %v40
  %v49 = vpack.c.b16 %v43, %v42
  %v50 = vpack.c.b16 %v45, %v44
  %v51 = vpack.c.b16 %v47, %v46
  %v54 = vunpack.c.l.b16 %v23
  %v55 = vunpack.c.l.b16 %v24
  %v56 = vpack.c.b16 %v55, %v54
  %vm58 = vcmask 130048
  %v60 = vsel %vm58, %v48, 0
  %v63 = vsel %vm58, %v49, 0
  %v66 = vsel %vm58, %v50, 0
  %v69 = vsel %vm58, %v51, 0
  %71 = vmatprep.subr.bf16.mxu0 0
  %72 = vmatpush1.bf16.msra.mxu0 %v56
  %73 = vmatprep.subr.bf16.mxu0 0
  %74 = vmatpush1.bf16.msra.mxu0 0
  %75 = vmatprep.subr.bf16.mxu0 0
  %76 = vmatpush1.bf16.msra.mxu0 0
  %77 = vmatprep.subr.bf16.mxu0 0
  %78 = vmatpush1.bf16.msra.mxu0 0
  %79 = vmatprep.subr.bf16.mxu0 0
  %80 = vmatpush1.bf16.msra.mxu0 0
  %81 = vmatprep.subr.bf16.mxu0 0
  %82 = vmatpush1.bf16.msra.mxu0 0
  %83 = vmatprep.subr.bf16.mxu0 0
  %84 = vmatpush1.bf16.msra.mxu0 0
  %85 = vmatprep.subr.bf16.mxu0 0
  %86 = vmatpush1.bf16.msra.mxu0 0
  %87 = vmatprep.subr.bf16.mxu0 0
  %88 = vmatpush1.bf16.msra.mxu0 0
  %89 = vmatprep.subr.bf16.mxu0 0
  %90 = vmatpush1.bf16.msra.mxu0 0
  %91 = vmatprep.subr.bf16.mxu0 0
  %92 = vmatpush1.bf16.msra.mxu0 0
  %93 = vmatprep.subr.bf16.mxu0 0
  %94 = vmatpush1.bf16.msra.mxu0 0
  %95 = vmatprep.subr.bf16.mxu0 0
  %96 = vmatpush1.bf16.msra.mxu0 0
  %97 = vmatprep.subr.bf16.mxu0 0
  %98 = vmatpush1.bf16.msra.mxu0 0
  %99 = vmatprep.subr.bf16.mxu0 0
  %100 = vmatpush1.bf16.msra.mxu0 0
  %101 = vmatprep.subr.bf16.mxu0 0
  %102 = vmatpush1.bf16.msra.mxu0 0
  %103 = vmatprep.mubr.bf16.mxu0 0
  %104 = vmatmul.mubr.bf16.gmra.mrb[0].mxu0 %v60
  %v105 = vpop.f32.mrb[0].mxu0
  %v106 = vadd.f32 %v30, %v105
  %v107 = vpop.f32.mrb[0].mxu0
  %v108 = vpop.f32.mrb[0].mxu0
  %v109 = vadd.f32 %v30, %v108
  %v110 = vpop.f32.mrb[0].mxu0
  %111 = vmatprep.mubr.bf16.mxu0 0
  %112 = vmatmul.mubr.bf16.gmra.mrb[0].mxu0 %v63
  %v113 = vpop.f32.mrb[0].mxu0
  %v114 = vadd.f32 %v30, %v113
  %v115 = vpop.f32.mrb[0].mxu0
  %v116 = vpop.f32.mrb[0].mxu0
  %v117 = vadd.f32 %v30, %v116
  %v118 = vpop.f32.mrb[0].mxu0
  %119 = vmatprep.mubr.bf16.mxu0 0
  %120 = vmatmul.mubr.bf16.gmra.mrb[0].mxu0 %v66
  %v121 = vpop.f32.mrb[0].mxu0
  %v122 = vadd.f32 %v30, %v121
  %v123 = vpop.f32.mrb[0].mxu0
  %v124 = vpop.f32.mrb[0].mxu0
  %v125 = vadd.f32 %v30, %v124
  %v126 = vpop.f32.mrb[0].mxu0
  %127 = vmatprep.mubr.bf16.mxu0 0
  %128 = vmatmul.mubr.bf16.gmra.mrb[0].mxu0 %v69
  %v129 = vpop.f32.mrb[0].mxu0
  %v130 = vadd.f32 %v30, %v129
  %v131 = vpop.f32.mrb[0].mxu0
  %v132 = vpop.f32.mrb[0].mxu0
  %v133 = vadd.f32 %v30, %v132
  %v134 = vpop.f32.mrb[0].mxu0
  %135 = vdwg.mxu0
  %136 = vst [vmem:[%s3] sm:$0xff] %v106
  %137 = vst [vmem:[%s3 + $0x8] sm:$0xff] %v109
  %138 = vst [vmem:[%s3 + $0x10] sm:$0xff] %v114
  %139 = vst [vmem:[%s3 + $0x18] sm:$0xff] %v117
  %140 = vst [vmem:[%s3 + $0x20] sm:$0xff] %v122
  %141 = vst [vmem:[%s3 + $0x28] sm:$0xff] %v125
  %142 = vst [vmem:[%s3 + $0x30] sm:$0xff] %v130
  %143 = vst [vmem:[%s3 + $0x38] sm:$0xff] %v133
  // Predicated region
  $region14: #{lstm_generator_forward.5} parent=0 // pred_check
    _
  $region15: #{lstm_generator_forward.5} parent=0 // pred_check_branch
    %145 = sbr.rel (0) target = $region17
  $region16: #{lstm_generator_forward.5} parent=0 // pred_region
    _
  $region17: #{lstm_generator_forward.5} parent=0 // pred_fallthru
    _
  // Predicated region
  $region18: #{lstm_generator_forward.5} parent=0 // pred_check
    _
  $region19: #{lstm_generator_forward.5} parent=0 // pred_check_branch
    %147 = sbr.rel (0) target = $region21
  $region20: #{lstm_generator_forward.5} parent=0 // pred_region
    _
  $region21: #{lstm_generator_forward.5} parent=0 // pred_fallthru
    _

// kernel: lstm_generator_forward.7
$region0: #{lstm_generator_forward.7}
  #allocation0 [shape = 'u32[]', space=smem, size = 0x4, offset = 0x4, fixed_abs, tag = 'smem constant byte address 0x4 - core index']
  #allocation1 [shape = 'u32[144,128]{1,0:T(1,128)}', space=vmem, size = 0x12000, scoped, tag = 'internal scratch']
  %s0 = inlined_call_operand.vmem [shape: bf16[64,32], index: 0, kind: input, shape index: {}]
  %s1 = inlined_call_operand.vmem [shape: bf16[32,128], index: 1, kind: input, shape index: {}]
  %s2 = inlined_call_operand.vmem [shape: f32[1,128], index: 2, kind: input, shape index: {}]
  %s3 = inlined_call_operand.vmem [shape: f32[64,128], index: 3, kind: output, shape index: {}]
  %s4 = sld [smem:[#allocation0]]
  $region22: #{lstm_generator_forward.7} parent=0
    _
  %s6 = ssub.s32 1, %s4
  %s7 = scalar_select 0, %s6, %s4
  // Predicated region
  $region2: #{lstm_generator_forward.7} parent=0 // pred_check
    _
  $region3: #{lstm_generator_forward.7} parent=0 // pred_check_branch
    %9 = sbr.rel (0) target = $region5
  $region4: #{lstm_generator_forward.7} parent=0 // pred_region
    _
  $region5: #{lstm_generator_forward.7} parent=0 // pred_fallthru
    _
  // Predicated region
  $region6: #{lstm_generator_forward.7} parent=0 // pred_check
    _
  $region7: #{lstm_generator_forward.7} parent=0 // pred_check_branch
    %11 = sbr.rel (0) target = $region9
  $region8: #{lstm_generator_forward.7} parent=0 // pred_region
    _
  $region9: #{lstm_generator_forward.7} parent=0 // pred_fallthru
    _
  // Predicated region
  $region10: #{lstm_generator_forward.7} parent=0 // pred_check
    _
  $region11: #{lstm_generator_forward.7} parent=0 // pred_check_branch
    %13 = sbr.rel (0) target = $region13
  $region12: #{lstm_generator_forward.7} parent=0 // pred_region
    _
  $region13: #{lstm_generator_forward.7} parent=0 // pred_fallthru
    _
  %v15 = vld [vmem:[%s0] sm:$0xf]
  %v16 = vld [vmem:[%s0 + $0x4] sm:$0xf]
  %v17 = vld [vmem:[%s0 + $0x8] sm:$0xf]
  %v18 = vld [vmem:[%s0 + $0xc] sm:$0xf]
  %v19 = vld [vmem:[%s0 + $0x10] sm:$0xf]
  %v20 = vld [vmem:[%s0 + $0x14] sm:$0xf]
  %v21 = vld [vmem:[%s0 + $0x18] sm:$0xf]
  %v22 = vld [vmem:[%s0 + $0x1c] sm:$0xf]
  %v23 = vld [vmem:[%s1] sm:$0xf]
  %v24 = vld [vmem:[%s1 + $0x4] sm:$0xf]
  %v25 = vld [vmem:[%s1 + $0x8] sm:$0xf]
  %v26 = vld [vmem:[%s1 + $0xc] sm:$0xf]
  %v27 = vld [vmem:[%s2] sm:$0x1]
  %v29 = vlaneseq
  %v30 = vshrl.u32 %v29, 7
  %v31 = vsub.s32 0, %v30
  %v32 = vrot.slane %v27, %v31
  %v42 = vunpack.c.l.b16 %v15
  %v43 = vunpack.c.l.b16 %v16
  %v44 = vunpack.c.l.b16 %v17
  %v45 = vunpack.c.l.b16 %v18
  %v46 = vunpack.c.l.b16 %v19
  %v47 = vunpack.c.l.b16 %v20
  %v48 = vunpack.c.l.b16 %v21
  %v49 = vunpack.c.l.b16 %v22
  %v50 = vpack.c.b16 %v43, %v42
  %v51 = vpack.c.b16 %v45, %v44
  %v52 = vpack.c.b16 %v47, %v46
  %v53 = vpack.c.b16 %v49, %v48
  %v58 = vunpack.c.l.b16 %v23
  %v59 = vunpack.c.l.b16 %v24
  %v60 = vunpack.c.l.b16 %v25
  %v61 = vunpack.c.l.b16 %v26
  %v62 = vpack.c.b16 %v59, %v58
  %v63 = vpack.c.b16 %v61, %v60
  %vm66 = vcmask 261120
  %v68 = vsel %vm66, %v50, 0
  %v71 = vsel %vm66, %v51, 0
  %v74 = vsel %vm66, %v52, 0
  %v77 = vsel %vm66, %v53, 0
  %79 = vmatprep.subr.bf16.mxu0 0
  %80 = vmatpush1.bf16.msra.mxu0 %v62
  %81 = vmatprep.subr.bf16.mxu0 0
  %82 = vmatpush1.bf16.msra.mxu0 %v63
  %83 = vmatprep.subr.bf16.mxu0 0
  %84 = vmatpush1.bf16.msra.mxu0 0
  %85 = vmatprep.subr.bf16.mxu0 0
  %86 = vmatpush1.bf16.msra.mxu0 0
  %87 = vmatprep.subr.bf16.mxu0 0
  %88 = vmatpush1.bf16.msra.mxu0 0
  %89 = vmatprep.subr.bf16.mxu0 0
  %90 = vmatpush1.bf16.msra.mxu0 0
  %91 = vmatprep.subr.bf16.mxu0 0
  %92 = vmatpush1.bf16.msra.mxu0 0
  %93 = vmatprep.subr.bf16.mxu0 0
  %94 = vmatpush1.bf16.msra.mxu0 0
  %95 = vmatprep.subr.bf16.mxu0 0
  %96 = vmatpush1.bf16.msra.mxu0 0
  %97 = vmatprep.subr.bf16.mxu0 0
  %98 = vmatpush1.bf16.msra.mxu0 0
  %99 = vmatprep.subr.bf16.mxu0 0
  %100 = vmatpush1.bf16.msra.mxu0 0
  %101 = vmatprep.subr.bf16.mxu0 0
  %102 = vmatpush1.bf16.msra.mxu0 0
  %103 = vmatprep.subr.bf16.mxu0 0
  %104 = vmatpush1.bf16.msra.mxu0 0
  %105 = vmatprep.subr.bf16.mxu0 0
  %106 = vmatpush1.bf16.msra.mxu0 0
  %107 = vmatprep.subr.bf16.mxu0 0
  %108 = vmatpush1.bf16.msra.mxu0 0
  %109 = vmatprep.subr.bf16.mxu0 0
  %110 = vmatpush1.bf16.msra.mxu0 0
  %111 = vmatprep.mubr.bf16.mxu0 0
  %112 = vmatmul.mubr.bf16.gmra.mrb[0].mxu0 %v68
  %v113 = vpop.f32.mrb[0].mxu0
  %v114 = vadd.f32 %v32, %v113
  %v115 = vpop.f32.mrb[0].mxu0
  %v116 = vpop.f32.mrb[0].mxu0
  %v117 = vadd.f32 %v32, %v116
  %v118 = vpop.f32.mrb[0].mxu0
  %119 = vmatprep.mubr.bf16.mxu0 0
  %120 = vmatmul.mubr.bf16.gmra.mrb[0].mxu0 %v71
  %v121 = vpop.f32.mrb[0].mxu0
  %v122 = vadd.f32 %v32, %v121
  %v123 = vpop.f32.mrb[0].mxu0
  %v124 = vpop.f32.mrb[0].mxu0
  %v125 = vadd.f32 %v32, %v124
  %v126 = vpop.f32.mrb[0].mxu0
  %127 = vmatprep.mubr.bf16.mxu0 0
  %128 = vmatmul.mubr.bf16.gmra.mrb[0].mxu0 %v74
  %v129 = vpop.f32.mrb[0].mxu0
  %v130 = vadd.f32 %v32, %v129
  %v131 = vpop.f32.mrb[0].mxu0
  %v132 = vpop.f32.mrb[0].mxu0
  %v133 = vadd.f32 %v32, %v132
  %v134 = vpop.f32.mrb[0].mxu0
  %135 = vmatprep.mubr.bf16.mxu0 0
  %136 = vmatmul.mubr.bf16.gmra.mrb[0].mxu0 %v77
  %v137 = vpop.f32.mrb[0].mxu0
  %v138 = vadd.f32 %v32, %v137
  %v139 = vpop.f32.mrb[0].mxu0
  %v140 = vpop.f32.mrb[0].mxu0
  %v141 = vadd.f32 %v32, %v140
  %v142 = vpop.f32.mrb[0].mxu0
  %143 = vdwg.mxu0
  %144 = vst [vmem:[%s3] sm:$0xff] %v114
  %145 = vst [vmem:[%s3 + $0x8] sm:$0xff] %v117
  %146 = vst [vmem:[%s3 + $0x10] sm:$0xff] %v122
  %147 = vst [vmem:[%s3 + $0x18] sm:$0xff] %v125
  %148 = vst [vmem:[%s3 + $0x20] sm:$0xff] %v130
  %149 = vst [vmem:[%s3 + $0x28] sm:$0xff] %v133
  %150 = vst [vmem:[%s3 + $0x30] sm:$0xff] %v138
  %151 = vst [vmem:[%s3 + $0x38] sm:$0xff] %v141
  // Predicated region
  $region14: #{lstm_generator_forward.7} parent=0 // pred_check
    _
  $region15: #{lstm_generator_forward.7} parent=0 // pred_check_branch
    %153 = sbr.rel (0) target = $region17
  $region16: #{lstm_generator_forward.7} parent=0 // pred_region
    _
  $region17: #{lstm_generator_forward.7} parent=0 // pred_fallthru
    _
  // Predicated region
  $region18: #{lstm_generator_forward.7} parent=0 // pred_check
    _
  $region19: #{lstm_generator_forward.7} parent=0 // pred_check_branch
    %155 = sbr.rel (0) target = $region21
  $region20: #{lstm_generator_forward.7} parent=0 // pred_region
    _
  $region21: #{lstm_generator_forward.7} parent=0 // pred_fallthru
    _

// kernel: lstm_generator_forward.6
$region0: #{lstm_generator_forward.6}
  #allocation0 [shape = 'u32[]', space=smem, size = 0x4, offset = 0x4, fixed_abs, tag = 'smem constant byte address 0x4 - core index']
  #allocation1 [shape = 'u32[144,128]{1,0:T(1,128)}', space=vmem, size = 0x12000, scoped, tag = 'internal scratch']
  #allocation2 [shape = 'f32[8,32]{1,0:T(8,128)}', space=vmem, size = 0x1000, scoped, tag = 'scratch operand']
  #allocation3 [shape = 'f32[8,32]{1,0:T(8,128)}', space=vmem, size = 0x1000, scoped, tag = 'scratch operand']
  %s0 = inlined_call_operand.vmem [shape: f32[8,8,128], index: 0, kind: input, shape index: {}]
  %s1 = inlined_call_operand.vmem [shape: f32[8,32], index: 1, kind: input, shape index: {}]
  %s2 = inlined_call_operand.vmem [shape: f32[8,32], index: 2, kind: input, shape index: {}]
  %s3 = inlined_call_operand.vmem [shape: bf16[32,128], index: 3, kind: input, shape index: {}]
  %s4 = inlined_call_operand.vmem [shape: bf16[8,8,32], index: 4, kind: output, shape index: {0}]
  %s5 = inlined_call_operand.vmem [shape: f32[8,32], index: 5, kind: output, shape index: {1}]
  %s6 = inlined_call_operand.vmem [shape: f32[8,32], index: 6, kind: output, shape index: {2}]
  %7 = xla_tuple %s4, %s5, %s6
  %s8 = sld [smem:[#allocation0]]
  $region46: #{lstm_generator_forward.6} parent=0
    _
  %s10 = ssub.s32 1, %s8
  %s11 = scalar_select 0, %s10, %s8
  // Predicated region
  $region2: #{lstm_generator_forward.6} parent=0 // pred_check
    _
  $region3: #{lstm_generator_forward.6} parent=0 // pred_check_branch
    %13 = sbr.rel (0) target = $region5
  $region4: #{lstm_generator_forward.6} parent=0 // pred_region
    _
  $region5: #{lstm_generator_forward.6} parent=0 // pred_fallthru
    _
  // Predicated region
  $region6: #{lstm_generator_forward.6} parent=0 // pred_check
    _
  $region7: #{lstm_generator_forward.6} parent=0 // pred_check_branch
    %15 = sbr.rel (0) target = $region9
  $region8: #{lstm_generator_forward.6} parent=0 // pred_region
    _
  $region9: #{lstm_generator_forward.6} parent=0 // pred_fallthru
    _
  // Predicated region
  $region10: #{lstm_generator_forward.6} parent=0 // pred_check
    _
  $region11: #{lstm_generator_forward.6} parent=0 // pred_check_branch
    %17 = sbr.rel (0) target = $region13
  $region12: #{lstm_generator_forward.6} parent=0 // pred_region
    _
  $region13: #{lstm_generator_forward.6} parent=0 // pred_fallthru
    _
  // Predicated region
  $region14: #{lstm_generator_forward.6} parent=0 // pred_check
    _
  $region15: #{lstm_generator_forward.6} parent=0 // pred_check_branch
    %19 = sbr.rel (0) target = $region17
  $region16: #{lstm_generator_forward.6} parent=0 // pred_region
    _
  $region17: #{lstm_generator_forward.6} parent=0 // pred_fallthru
    _
  %p21 = scmp.eq.s32.totalorder 0, 0
  // Predicated region
  $region18: #{lstm_generator_forward.6} parent=0 // pred_check
    %p22 = pneg %p21
  $region19: #{lstm_generator_forward.6} parent=0 // pred_check_branch
    %24 = sbr.rel (%p22) target = $region21
  $region20: #{lstm_generator_forward.6} parent=0 // pred_region
    %v25 = vld [vmem:[%s1] sm:$0xff]
    %vm26 = vcmask 261120
    %27 = vst.msk [vmem:[#allocation2] sm:$0xff] %vm26, %v25
    %v28 = vld [vmem:[%s2] sm:$0xff]
    %29 = vst.msk [vmem:[#allocation3] sm:$0xff] %vm26, %v28
  $region21: #{lstm_generator_forward.6} parent=0 // pred_fallthru
    _
  %v30 = vld [vmem:[#allocation2] sm:$0xff]
  %v31 = vld [vmem:[#allocation3] sm:$0xff]
  %v32 = vld [vmem:[%s0] sm:$0xff]
  %v33 = vpack.c.bf16 %v30, %v30
  %v34 = vld [vmem:[%s3] sm:$0xf]
  %v35 = vld [vmem:[%s3 + $0x4] sm:$0xf]
  %v36 = vld [vmem:[%s3 + $0x8] sm:$0xf]
  %v37 = vld [vmem:[%s3 + $0xc] sm:$0xf]
  %v42 = vunpack.c.l.b16 %v34
  %v43 = vunpack.c.l.b16 %v35
  %v44 = vunpack.c.l.b16 %v36
  %v45 = vunpack.c.l.b16 %v37
  %v46 = vpack.c.b16 %v43, %v42
  %v47 = vpack.c.b16 %v45, %v44
  %vm50 = vcmask 261120
  %v52 = vsel %vm50, %v33, 0
  %54 = vmatprep.subr.bf16.mxu0 0
  %55 = vmatpush1.bf16.msra.mxu0 %v46
  %56 = vmatprep.subr.bf16.mxu0 0
  %57 = vmatpush1.bf16.msra.mxu0 %v47
  %58 = vmatprep.subr.bf16.mxu0 0
  %59 = vmatpush1.bf16.msra.mxu0 0
  %60 = vmatprep.subr.bf16.mxu0 0
  %61 = vmatpush1.bf16.msra.mxu0 0
  %62 = vmatprep.subr.bf16.mxu0 0
  %63 = vmatpush1.bf16.msra.mxu0 0
  %64 = vmatprep.subr.bf16.mxu0 0
  %65 = vmatpush1.bf16.msra.mxu0 0
  %66 = vmatprep.subr.bf16.mxu0 0
  %67 = vmatpush1.bf16.msra.mxu0 0
  %68 = vmatprep.subr.bf16.mxu0 0
  %69 = vmatpush1.bf16.msra.mxu0 0
  %70 = vmatprep.subr.bf16.mxu0 0
  %71 = vmatpush1.bf16.msra.mxu0 0
  %72 = vmatprep.subr.bf16.mxu0 0
  %73 = vmatpush1.bf16.msra.mxu0 0
  %74 = vmatprep.subr.bf16.mxu0 0
  %75 = vmatpush1.bf16.msra.mxu0 0
  %76 = vmatprep.subr.bf16.mxu0 0
  %77 = vmatpush1.bf16.msra.mxu0 0
  %78 = vmatprep.subr.bf16.mxu0 0
  %79 = vmatpush1.bf16.msra.mxu0 0
  %80 = vmatprep.subr.bf16.mxu0 0
  %81 = vmatpush1.bf16.msra.mxu0 0
  %82 = vmatprep.subr.bf16.mxu0 0
  %83 = vmatpush1.bf16.msra.mxu0 0
  %84 = vmatprep.subr.bf16.mxu0 0
  %85 = vmatpush1.bf16.msra.mxu0 0
  %86 = vmatprep.mubr.bf16.mxu0 0
  %87 = vmatmul.mubr.bf16.gmra.mrb[0].mxu0 %v52
  %v88 = vpop.f32.mrb[0].mxu0
  %v89 = vadd.f32 0.0, %v88
  %v90 = vpop.f32.mrb[0].mxu0
  %v91 = vpop.f32.mrb[0].mxu0
  %v92 = vpop.f32.mrb[0].mxu0
  %93 = vdwg.mxu0
  %v94 = vadd.f32 %v32, %v89
  %v95 = vxor.u32 %v94, 2147483648
  %v96 = vmul.f32 %v95, 1.442695
  %v97 = vpow.pop %v96
  %v98 = vadd.f32 %v97, 1.0
  %v99 = vrcp.pop %v98
  %v100 = vmul.f32 1.0, %v99
  %v101 = vtanh.pop %v94
  %103 = vrot.lane.b32.xlu0 %v31, 32
  %v104 = vpop.permute.xlu0 %103
  %v106 = vmul.f32 %v100, %v104
  %108 = vrot.lane.b32.xlu0 %v101, 64
  %v109 = vpop.permute.xlu0 %108
  %v111 = vmul.f32 %v100, %v109
  %113 = vrot.lane.b32.xlu0 %v111, 32
  %v114 = vpop.permute.xlu0 %113
  %v116 = vadd.f32 %v106, %v114
  %v117 = vtanh.pop %v116
  %119 = vrot.lane.b32.xlu0 %v117, 64
  %v120 = vpop.permute.xlu0 %119
  %v122 = vmul.f32 %v100, %v120
  %124 = vrot.lane.b32.xlu0 %v122, 32
  %v125 = vpop.permute.xlu0 %124
  %127 = vst.msk [vmem:[#allocation2] sm:$0xff] %vm50, %v125
  %129 = vrot.lane.b32.xlu0 %v116, 96
  %v130 = vpop.permute.xlu0 %129
  %132 = vst.msk [vmem:[#allocation3] sm:$0xff] %vm50, %v130
  %v133 = vpack.c.bf16 %v122, %v122
  %v135 = vunpack.c.l.b16 %v133
  %v136 = vpack.c.b16 %v135, %v135
  %137 = vrot.lane.b32.xlu0 %v136, 32
  %v138 = vpop.permute.xlu0 %137
  %vm140 = vcmask 257024
  %141 = vst.msk [vmem:[%s4] sm:$0xf] %vm140, %v138
  %v142 = vld [vmem:[#allocation2] sm:$0xff]
  %v143 = vld [vmem:[#allocation3] sm:$0xff]
  %s144 = scalar_lea.vmem %s0, 8
  %v145 = vld [vmem:[%s144] sm:$0xff]
  %v146 = vpack.c.bf16 %v142, %v142
  %v147 = vld [vmem:[%s3] sm:$0xf]
  %v148 = vld [vmem:[%s3 + $0x4] sm:$0xf]
  %v149 = vld [vmem:[%s3 + $0x8] sm:$0xf]
  %v150 = vld [vmem:[%s3 + $0xc] sm:$0xf]
  %v155 = vunpack.c.l.b16 %v147
  %v156 = vunpack.c.l.b16 %v148
  %v157 = vunpack.c.l.b16 %v149
  %v158 = vunpack.c.l.b16 %v150
  %v159 = vpack.c.b16 %v156, %v155
  %v160 = vpack.c.b16 %v158, %v157
  %v164 = vsel %vm50, %v146, 0
  %166 = vmatprep.subr.bf16.mxu0 0
  %167 = vmatpush1.bf16.msra.mxu0 %v159
  %168 = vmatprep.subr.bf16.mxu0 0
  %169 = vmatpush1.bf16.msra.mxu0 %v160
  %170 = vmatprep.subr.bf16.mxu0 0
  %171 = vmatpush1.bf16.msra.mxu0 0
  %172 = vmatprep.subr.bf16.mxu0 0
  %173 = vmatpush1.bf16.msra.mxu0 0
  %174 = vmatprep.subr.bf16.mxu0 0
  %175 = vmatpush1.bf16.msra.mxu0 0
  %176 = vmatprep.subr.bf16.mxu0 0
  %177 = vmatpush1.bf16.msra.mxu0 0
  %178 = vmatprep.subr.bf16.mxu0 0
  %179 = vmatpush1.bf16.msra.mxu0 0
  %180 = vmatprep.subr.bf16.mxu0 0
  %181 = vmatpush1.bf16.msra.mxu0 0
  %182 = vmatprep.subr.bf16.mxu0 0
  %183 = vmatpush1.bf16.msra.mxu0 0
  %184 = vmatprep.subr.bf16.mxu0 0
  %185 = vmatpush1.bf16.msra.mxu0 0
  %186 = vmatprep.subr.bf16.mxu0 0
  %187 = vmatpush1.bf16.msra.mxu0 0
  %188 = vmatprep.subr.bf16.mxu0 0
  %189 = vmatpush1.bf16.msra.mxu0 0
  %190 = vmatprep.subr.bf16.mxu0 0
  %191 = vmatpush1.bf16.msra.mxu0 0
  %192 = vmatprep.subr.bf16.mxu0 0
  %193 = vmatpush1.bf16.msra.mxu0 0
  %194 = vmatprep.subr.bf16.mxu0 0
  %195 = vmatpush1.bf16.msra.mxu0 0
  %196 = vmatprep.subr.bf16.mxu0 0
  %197 = vmatpush1.bf16.msra.mxu0 0
  %198 = vmatprep.mubr.bf16.mxu0 0
  %199 = vmatmul.mubr.bf16.gmra.mrb[0].mxu0 %v164
  %v200 = vpop.f32.mrb[0].mxu0
  %v201 = vadd.f32 0.0, %v200
  %v202 = vpop.f32.mrb[0].mxu0
  %v203 = vpop.f32.mrb[0].mxu0
  %v204 = vpop.f32.mrb[0].mxu0
  %205 = vdwg.mxu0
  %v206 = vadd.f32 %v145, %v201
  %v207 = vxor.u32 %v206, 2147483648
  %v208 = vmul.f32 %v207, 1.442695
  %v209 = vpow.pop %v208
  %v210 = vadd.f32 %v209, 1.0
  %v211 = vrcp.pop %v210
  %v212 = vmul.f32 1.0, %v211
  %v213 = vtanh.pop %v206
  %215 = vrot.lane.b32.xlu0 %v143, 32
  %v216 = vpop.permute.xlu0 %215
  %v218 = vmul.f32 %v212, %v216
  %220 = vrot.lane.b32.xlu0 %v213, 64
  %v221 = vpop.permute.xlu0 %220
  %v223 = vmul.f32 %v212, %v221
  %225 = vrot.lane.b32.xlu0 %v223, 32
  %v226 = vpop.permute.xlu0 %225
  %v228 = vadd.f32 %v218, %v226
  %v229 = vtanh.pop %v228
  %231 = vrot.lane.b32.xlu0 %v229, 64
  %v232 = vpop.permute.xlu0 %231
  %v234 = vmul.f32 %v212, %v232
  %236 = vrot.lane.b32.xlu0 %v234, 32
  %v237 = vpop.permute.xlu0 %236
  %239 = vst.msk [vmem:[#allocation2] sm:$0xff] %vm50, %v237
  %241 = vrot.lane.b32.xlu0 %v228, 96
  %v242 = vpop.permute.xlu0 %241
  %244 = vst.msk [vmem:[#allocation3] sm:$0xff] %vm50, %v242
  %v245 = vpack.c.bf16 %v234, %v234
  %v247 = vunpack.c.l.b16 %v245
  %v248 = vpack.c.b16 %v247, %v247
  %249 = vrot.lane.b32.xlu0 %v248, 32
  %v250 = vpop.permute.xlu0 %249
  %s252 = scalar_lea.vmem %s4, 4
  %253 = vst.msk [vmem:[%s252] sm:$0xf] %vm140, %v250
  %v254 = vld [vmem:[#allocation2] sm:$0xff]
  %v255 = vld [vmem:[#allocation3] sm:$0xff]
  %s256 = scalar_lea.vmem %s0, 16
  %v257 = vld [vmem:[%s256] sm:$0xff]
  %v258 = vpack.c.bf16 %v254, %v254
  %v259 = vld [vmem:[%s3] sm:$0xf]
  %v260 = vld [vmem:[%s3 + $0x4] sm:$0xf]
  %v261 = vld [vmem:[%s3 + $0x8] sm:$0xf]
  %v262 = vld [vmem:[%s3 + $0xc] sm:$0xf]
  %v267 = vunpack.c.l.b16 %v259
  %v268 = vunpack.c.l.b16 %v260
  %v269 = vunpack.c.l.b16 %v261
  %v270 = vunpack.c.l.b16 %v262
  %v271 = vpack.c.b16 %v268, %v267
  %v272 = vpack.c.b16 %v270, %v269
  %v276 = vsel %vm50, %v258, 0
  %278 = vmatprep.subr.bf16.mxu0 0
  %279 = vmatpush1.bf16.msra.mxu0 %v271
  %280 = vmatprep.subr.bf16.mxu0 0
  %281 = vmatpush1.bf16.msra.mxu0 %v272
  %282 = vmatprep.subr.bf16.mxu0 0
  %283 = vmatpush1.bf16.msra.mxu0 0
  %284 = vmatprep.subr.bf16.mxu0 0
  %285 = vmatpush1.bf16.msra.mxu0 0
  %286 = vmatprep.subr.bf16.mxu0 0
  %287 = vmatpush1.bf16.msra.mxu0 0
  %288 = vmatprep.subr.bf16.mxu0 0
  %289 = vmatpush1.bf16.msra.mxu0 0
  %290 = vmatprep.subr.bf16.mxu0 0
  %291 = vmatpush1.bf16.msra.mxu0 0
  %292 = vmatprep.subr.bf16.mxu0 0
  %293 = vmatpush1.bf16.msra.mxu0 0
  %294 = vmatprep.subr.bf16.mxu0 0
  %295 = vmatpush1.bf16.msra.mxu0 0
  %296 = vmatprep.subr.bf16.mxu0 0
  %297 = vmatpush1.bf16.msra.mxu0 0
  %298 = vmatprep.subr.bf16.mxu0 0
  %299 = vmatpush1.bf16.msra.mxu0 0
  %300 = vmatprep.subr.bf16.mxu0 0
  %301 = vmatpush1.bf16.msra.mxu0 0
  %302 = vmatprep.subr.bf16.mxu0 0
  %303 = vmatpush1.bf16.msra.mxu0 0
  %304 = vmatprep.subr.bf16.mxu0 0
  %305 = vmatpush1.bf16.msra.mxu0 0
  %306 = vmatprep.subr.bf16.mxu0 0
  %307 = vmatpush1.bf16.msra.mxu0 0
  %308 = vmatprep.subr.bf16.mxu0 0
  %309 = vmatpush1.bf16.msra.mxu0 0
  %310 = vmatprep.mubr.bf16.mxu0 0
  %311 = vmatmul.mubr.bf16.gmra.mrb[0].mxu0 %v276
  %v312 = vpop.f32.mrb[0].mxu0
  %v313 = vadd.f32 0.0, %v312
  %v314 = vpop.f32.mrb[0].mxu0
  %v315 = vpop.f32.mrb[0].mxu0
  %v316 = vpop.f32.mrb[0].mxu0
  %317 = vdwg.mxu0
  %v318 = vadd.f32 %v257, %v313
  %v319 = vxor.u32 %v318, 2147483648
  %v320 = vmul.f32 %v319, 1.442695
  %v321 = vpow.pop %v320
  %v322 = vadd.f32 %v321, 1.0
  %v323 = vrcp.pop %v322
  %v324 = vmul.f32 1.0, %v323
  %v325 = vtanh.pop %v318
  %327 = vrot.lane.b32.xlu0 %v255, 32
  %v328 = vpop.permute.xlu0 %327
  %v330 = vmul.f32 %v324, %v328
  %332 = vrot.lane.b32.xlu0 %v325, 64
  %v333 = vpop.permute.xlu0 %332
  %v335 = vmul.f32 %v324, %v333
  %337 = vrot.lane.b32.xlu0 %v335, 32
  %v338 = vpop.permute.xlu0 %337
  %v340 = vadd.f32 %v330, %v338
  %v341 = vtanh.pop %v340
  %343 = vrot.lane.b32.xlu0 %v341, 64
  %v344 = vpop.permute.xlu0 %343
  %v346 = vmul.f32 %v324, %v344
  %348 = vrot.lane.b32.xlu0 %v346, 32
  %v349 = vpop.permute.xlu0 %348
  %351 = vst.msk [vmem:[#allocation2] sm:$0xff] %vm50, %v349
  %353 = vrot.lane.b32.xlu0 %v340, 96
  %v354 = vpop.permute.xlu0 %353
  %356 = vst.msk [vmem:[#allocation3] sm:$0xff] %vm50, %v354
  %v357 = vpack.c.bf16 %v346, %v346
  %v359 = vunpack.c.l.b16 %v357
  %v360 = vpack.c.b16 %v359, %v359
  %361 = vrot.lane.b32.xlu0 %v360, 32
  %v362 = vpop.permute.xlu0 %361
  %s364 = scalar_lea.vmem %s4, 8
  %365 = vst.msk [vmem:[%s364] sm:$0xf] %vm140, %v362
  %v366 = vld [vmem:[#allocation2] sm:$0xff]
  %v367 = vld [vmem:[#allocation3] sm:$0xff]
  %s368 = scalar_lea.vmem %s0, 24
  %v369 = vld [vmem:[%s368] sm:$0xff]
  %v370 = vpack.c.bf16 %v366, %v366
  %v371 = vld [vmem:[%s3] sm:$0xf]
  %v372 = vld [vmem:[%s3 + $0x4] sm:$0xf]
  %v373 = vld [vmem:[%s3 + $0x8] sm:$0xf]
  %v374 = vld [vmem:[%s3 + $0xc] sm:$0xf]
  %v379 = vunpack.c.l.b16 %v371
  %v380 = vunpack.c.l.b16 %v372
  %v381 = vunpack.c.l.b16 %v373
  %v382 = vunpack.c.l.b16 %v374
  %v383 = vpack.c.b16 %v380, %v379
  %v384 = vpack.c.b16 %v382, %v381
  %v388 = vsel %vm50, %v370, 0
  %390 = vmatprep.subr.bf16.mxu0 0
  %391 = vmatpush1.bf16.msra.mxu0 %v383
  %392 = vmatprep.subr.bf16.mxu0 0
  %393 = vmatpush1.bf16.msra.mxu0 %v384
  %394 = vmatprep.subr.bf16.mxu0 0
  %395 = vmatpush1.bf16.msra.mxu0 0
  %396 = vmatprep.subr.bf16.mxu0 0
  %397 = vmatpush1.bf16.msra.mxu0 0
  %398 = vmatprep.subr.bf16.mxu0 0
  %399 = vmatpush1.bf16.msra.mxu0 0
  %400 = vmatprep.subr.bf16.mxu0 0
  %401 = vmatpush1.bf16.msra.mxu0 0
  %402 = vmatprep.subr.bf16.mxu0 0
  %403 = vmatpush1.bf16.msra.mxu0 0
  %404 = vmatprep.subr.bf16.mxu0 0
  %405 = vmatpush1.bf16.msra.mxu0 0
  %406 = vmatprep.subr.bf16.mxu0 0
  %407 = vmatpush1.bf16.msra.mxu0 0
  %408 = vmatprep.subr.bf16.mxu0 0
  %409 = vmatpush1.bf16.msra.mxu0 0
  %410 = vmatprep.subr.bf16.mxu0 0
  %411 = vmatpush1.bf16.msra.mxu0 0
  %412 = vmatprep.subr.bf16.mxu0 0
  %413 = vmatpush1.bf16.msra.mxu0 0
  %414 = vmatprep.subr.bf16.mxu0 0
  %415 = vmatpush1.bf16.msra.mxu0 0
  %416 = vmatprep.subr.bf16.mxu0 0
  %417 = vmatpush1.bf16.msra.mxu0 0
  %418 = vmatprep.subr.bf16.mxu0 0
  %419 = vmatpush1.bf16.msra.mxu0 0
  %420 = vmatprep.subr.bf16.mxu0 0
  %421 = vmatpush1.bf16.msra.mxu0 0
  %422 = vmatprep.mubr.bf16.mxu0 0
  %423 = vmatmul.mubr.bf16.gmra.mrb[0].mxu0 %v388
  %v424 = vpop.f32.mrb[0].mxu0
  %v425 = vadd.f32 0.0, %v424
  %v426 = vpop.f32.mrb[0].mxu0
  %v427 = vpop.f32.mrb[0].mxu0
  %v428 = vpop.f32.mrb[0].mxu0
  %429 = vdwg.mxu0
  %v430 = vadd.f32 %v369, %v425
  %v431 = vxor.u32 %v430, 2147483648
  %v432 = vmul.f32 %v431, 1.442695
  %v433 = vpow.pop %v432
  %v434 = vadd.f32 %v433, 1.0
  %v435 = vrcp.pop %v434
  %v436 = vmul.f32 1.0, %v435
  %v437 = vtanh.pop %v430
  %439 = vrot.lane.b32.xlu0 %v367, 32
  %v440 = vpop.permute.xlu0 %439
  %v442 = vmul.f32 %v436, %v440
  %444 = vrot.lane.b32.xlu0 %v437, 64
  %v445 = vpop.permute.xlu0 %444
  %v447 = vmul.f32 %v436, %v445
  %449 = vrot.lane.b32.xlu0 %v447, 32
  %v450 = vpop.permute.xlu0 %449
  %v452 = vadd.f32 %v442, %v450
  %v453 = vtanh.pop %v452
  %455 = vrot.lane.b32.xlu0 %v453, 64
  %v456 = vpop.permute.xlu0 %455
  %v458 = vmul.f32 %v436, %v456
  %460 = vrot.lane.b32.xlu0 %v458, 32
  %v461 = vpop.permute.xlu0 %460
  %463 = vst.msk [vmem:[#allocation2] sm:$0xff] %vm50, %v461
  %465 = vrot.lane.b32.xlu0 %v452, 96
  %v466 = vpop.permute.xlu0 %465
  %468 = vst.msk [vmem:[#allocation3] sm:$0xff] %vm50, %v466
  %v469 = vpack.c.bf16 %v458, %v458
  %v471 = vunpack.c.l.b16 %v469
  %v472 = vpack.c.b16 %v471, %v471
  %473 = vrot.lane.b32.xlu0 %v472, 32
  %v474 = vpop.permute.xlu0 %473
  %s476 = scalar_lea.vmem %s4, 12
  %477 = vst.msk [vmem:[%s476] sm:$0xf] %vm140, %v474
  %v478 = vld [vmem:[#allocation2] sm:$0xff]
  %v479 = vld [vmem:[#allocation3] sm:$0xff]
  %s480 = scalar_lea.vmem %s0, 32
  %v481 = vld [vmem:[%s480] sm:$0xff]
  %v482 = vpack.c.bf16 %v478, %v478
  %v483 = vld [vmem:[%s3] sm:$0xf]
  %v484 = vld [vmem:[%s3 + $0x4] sm:$0xf]
  %v485 = vld [vmem:[%s3 + $0x8] sm:$0xf]
  %v486 = vld [vmem:[%s3 + $0xc] sm:$0xf]
  %v491 = vunpack.c.l.b16 %v483
  %v492 = vunpack.c.l.b16 %v484
  %v493 = vunpack.c.l.b16 %v485
  %v494 = vunpack.c.l.b16 %v486
  %v495 = vpack.c.b16 %v492, %v491
  %v496 = vpack.c.b16 %v494, %v493
  %v500 = vsel %vm50, %v482, 0
  %502 = vmatprep.subr.bf16.mxu0 0
  %503 = vmatpush1.bf16.msra.mxu0 %v495
  %504 = vmatprep.subr.bf16.mxu0 0
  %505 = vmatpush1.bf16.msra.mxu0 %v496
  %506 = vmatprep.subr.bf16.mxu0 0
  %507 = vmatpush1.bf16.msra.mxu0 0
  %508 = vmatprep.subr.bf16.mxu0 0
  %509 = vmatpush1.bf16.msra.mxu0 0
  %510 = vmatprep.subr.bf16.mxu0 0
  %511 = vmatpush1.bf16.msra.mxu0 0
  %512 = vmatprep.subr.bf16.mxu0 0
  %513 = vmatpush1.bf16.msra.mxu0 0
  %514 = vmatprep.subr.bf16.mxu0 0
  %515 = vmatpush1.bf16.msra.mxu0 0
  %516 = vmatprep.subr.bf16.mxu0 0
  %517 = vmatpush1.bf16.msra.mxu0 0
  %518 = vmatprep.subr.bf16.mxu0 0
  %519 = vmatpush1.bf16.msra.mxu0 0
  %520 = vmatprep.subr.bf16.mxu0 0
  %521 = vmatpush1.bf16.msra.mxu0 0
  %522 = vmatprep.subr.bf16.mxu0 0
  %523 = vmatpush1.bf16.msra.mxu0 0
  %524 = vmatprep.subr.bf16.mxu0 0
  %525 = vmatpush1.bf16.msra.mxu0 0
  %526 = vmatprep.subr.bf16.mxu0 0
  %527 = vmatpush1.bf16.msra.mxu0 0
  %528 = vmatprep.subr.bf16.mxu0 0
  %529 = vmatpush1.bf16.msra.mxu0 0
  %530 = vmatprep.subr.bf16.mxu0 0
  %531 = vmatpush1.bf16.msra.mxu0 0
  %532 = vmatprep.subr.bf16.mxu0 0
  %533 = vmatpush1.bf16.msra.mxu0 0
  %534 = vmatprep.mubr.bf16.mxu0 0
  %535 = vmatmul.mubr.bf16.gmra.mrb[0].mxu0 %v500
  %v536 = vpop.f32.mrb[0].mxu0
  %v537 = vadd.f32 0.0, %v536
  %v538 = vpop.f32.mrb[0].mxu0
  %v539 = vpop.f32.mrb[0].mxu0
  %v540 = vpop.f32.mrb[0].mxu0
  %541 = vdwg.mxu0
  %v542 = vadd.f32 %v481, %v537
  %v543 = vxor.u32 %v542, 2147483648
  %v544 = vmul.f32 %v543, 1.442695
  %v545 = vpow.pop %v544
  %v546 = vadd.f32 %v545, 1.0
  %v547 = vrcp.pop %v546
  %v548 = vmul.f32 1.0, %v547
  %v549 = vtanh.pop %v542
  %551 = vrot.lane.b32.xlu0 %v479, 32
  %v552 = vpop.permute.xlu0 %551
  %v554 = vmul.f32 %v548, %v552
  %556 = vrot.lane.b32.xlu0 %v549, 64
  %v557 = vpop.permute.xlu0 %556
  %v559 = vmul.f32 %v548, %v557
  %561 = vrot.lane.b32.xlu0 %v559, 32
  %v562 = vpop.permute.xlu0 %561
  %v564 = vadd.f32 %v554, %v562
  %v565 = vtanh.pop %v564
  %567 = vrot.lane.b32.xlu0 %v565, 64
  %v568 = vpop.permute.xlu0 %567
  %v570 = vmul.f32 %v548, %v568
  %572 = vrot.lane.b32.xlu0 %v570, 32
  %v573 = vpop.permute.xlu0 %572
  %575 = vst.msk [vmem:[#allocation2] sm:$0xff] %vm50, %v573
  %577 = vrot.lane.b32.xlu0 %v564, 96
  %v578 = vpop.permute.xlu0 %577
  %580 = vst.msk [vmem:[#allocation3] sm:$0xff] %vm50, %v578
  %v581 = vpack.c.bf16 %v570, %v570
  %v583 = vunpack.c.l.b16 %v581
  %v584 = vpack.c.b16 %v583, %v583
  %585 = vrot.lane.b32.xlu0 %v584, 32
  %v586 = vpop.permute.xlu0 %585
  %s588 = scalar_lea.vmem %s4, 16
  %589 = vst.msk [vmem:[%s588] sm:$0xf] %vm140, %v586
  %v590 = vld [vmem:[#allocation2] sm:$0xff]
  %v591 = vld [vmem:[#allocation3] sm:$0xff]
  %s592 = scalar_lea.vmem %s0, 40
  %v593 = vld [vmem:[%s592] sm:$0xff]
  %v594 = vpack.c.bf16 %v590, %v590
  %v595 = vld [vmem:[%s3] sm:$0xf]
  %v596 = vld [vmem:[%s3 + $0x4] sm:$0xf]
  %v597 = vld [vmem:[%s3 + $0x8] sm:$0xf]
  %v598 = vld [vmem:[%s3 + $0xc] sm:$0xf]
  %v603 = vunpack.c.l.b16 %v595
  %v604 = vunpack.c.l.b16 %v596
  %v605 = vunpack.c.l.b16 %v597
  %v606 = vunpack.c.l.b16 %v598
  %v607 = vpack.c.b16 %v604, %v603
  %v608 = vpack.c.b16 %v606, %v605
  %v612 = vsel %vm50, %v594, 0
  %614 = vmatprep.subr.bf16.mxu0 0
  %615 = vmatpush1.bf16.msra.mxu0 %v607
  %616 = vmatprep.subr.bf16.mxu0 0
  %617 = vmatpush1.bf16.msra.mxu0 %v608
  %618 = vmatprep.subr.bf16.mxu0 0
  %619 = vmatpush1.bf16.msra.mxu0 0
  %620 = vmatprep.subr.bf16.mxu0 0
  %621 = vmatpush1.bf16.msra.mxu0 0
  %622 = vmatprep.subr.bf16.mxu0 0
  %623 = vmatpush1.bf16.msra.mxu0 0
  %624 = vmatprep.subr.bf16.mxu0 0
  %625 = vmatpush1.bf16.msra.mxu0 0
  %626 = vmatprep.subr.bf16.mxu0 0
  %627 = vmatpush1.bf16.msra.mxu0 0
  %628 = vmatprep.subr.bf16.mxu0 0
  %629 = vmatpush1.bf16.msra.mxu0 0
  %630 = vmatprep.subr.bf16.mxu0 0
  %631 = vmatpush1.bf16.msra.mxu0 0
  %632 = vmatprep.subr.bf16.mxu0 0
  %633 = vmatpush1.bf16.msra.mxu0 0
  %634 = vmatprep.subr.bf16.mxu0 0
  %635 = vmatpush1.bf16.msra.mxu0 0
  %636 = vmatprep.subr.bf16.mxu0 0
  %637 = vmatpush1.bf16.msra.mxu0 0
  %638 = vmatprep.subr.bf16.mxu0 0
  %639 = vmatpush1.bf16.msra.mxu0 0
  %640 = vmatprep.subr.bf16.mxu0 0
  %641 = vmatpush1.bf16.msra.mxu0 0
  %642 = vmatprep.subr.bf16.mxu0 0
  %643 = vmatpush1.bf16.msra.mxu0 0
  %644 = vmatprep.subr.bf16.mxu0 0
  %645 = vmatpush1.bf16.msra.mxu0 0
  %646 = vmatprep.mubr.bf16.mxu0 0
  %647 = vmatmul.mubr.bf16.gmra.mrb[0].mxu0 %v612
  %v648 = vpop.f32.mrb[0].mxu0
  %v649 = vadd.f32 0.0, %v648
  %v650 = vpop.f32.mrb[0].mxu0
  %v651 = vpop.f32.mrb[0].mxu0
  %v652 = vpop.f32.mrb[0].mxu0
  %653 = vdwg.mxu0
  %v654 = vadd.f32 %v593, %v649
  %v655 = vxor.u32 %v654, 2147483648
  %v656 = vmul.f32 %v655, 1.442695
  %v657 = vpow.pop %v656
  %v658 = vadd.f32 %v657, 1.0
  %v659 = vrcp.pop %v658
  %v660 = vmul.f32 1.0, %v659
  %v661 = vtanh.pop %v654
  %663 = vrot.lane.b32.xlu0 %v591, 32
  %v664 = vpop.permute.xlu0 %663
  %v666 = vmul.f32 %v660, %v664
  %668 = vrot.lane.b32.xlu0 %v661, 64
  %v669 = vpop.permute.xlu0 %668
  %v671 = vmul.f32 %v660, %v669
  %673 = vrot.lane.b32.xlu0 %v671, 32
  %v674 = vpop.permute.xlu0 %673
  %v676 = vadd.f32 %v666, %v674
  %v677 = vtanh.pop %v676
  %679 = vrot.lane.b32.xlu0 %v677, 64
  %v680 = vpop.permute.xlu0 %679
  %v682 = vmul.f32 %v660, %v680
  %684 = vrot.lane.b32.xlu0 %v682, 32
  %v685 = vpop.permute.xlu0 %684
  %687 = vst.msk [vmem:[#allocation2] sm:$0xff] %vm50, %v685
  %689 = vrot.lane.b32.xlu0 %v676, 96
  %v690 = vpop.permute.xlu0 %689
  %692 = vst.msk [vmem:[#allocation3] sm:$0xff] %vm50, %v690
  %v693 = vpack.c.bf16 %v682, %v682
  %v695 = vunpack.c.l.b16 %v693
  %v696 = vpack.c.b16 %v695, %v695
  %697 = vrot.lane.b32.xlu0 %v696, 32
  %v698 = vpop.permute.xlu0 %697
  %s700 = scalar_lea.vmem %s4, 20
  %701 = vst.msk [vmem:[%s700] sm:$0xf] %vm140, %v698
  %v702 = vld [vmem:[#allocation2] sm:$0xff]
  %v703 = vld [vmem:[#allocation3] sm:$0xff]
  %s704 = scalar_lea.vmem %s0, 48
  %v705 = vld [vmem:[%s704] sm:$0xff]
  %v706 = vpack.c.bf16 %v702, %v702
  %v707 = vld [vmem:[%s3] sm:$0xf]
  %v708 = vld [vmem:[%s3 + $0x4] sm:$0xf]
  %v709 = vld [vmem:[%s3 + $0x8] sm:$0xf]
  %v710 = vld [vmem:[%s3 + $0xc] sm:$0xf]
  %v715 = vunpack.c.l.b16 %v707
  %v716 = vunpack.c.l.b16 %v708
  %v717 = vunpack.c.l.b16 %v709
  %v718 = vunpack.c.l.b16 %v710
  %v719 = vpack.c.b16 %v716, %v715
  %v720 = vpack.c.b16 %v718, %v717
  %v724 = vsel %vm50, %v706, 0
  %726 = vmatprep.subr.bf16.mxu0 0
  %727 = vmatpush1.bf16.msra.mxu0 %v719
  %728 = vmatprep.subr.bf16.mxu0 0
  %729 = vmatpush1.bf16.msra.mxu0 %v720
  %730 = vmatprep.subr.bf16.mxu0 0
  %731 = vmatpush1.bf16.msra.mxu0 0
  %732 = vmatprep.subr.bf16.mxu0 0
  %733 = vmatpush1.bf16.msra.mxu0 0
  %734 = vmatprep.subr.bf16.mxu0 0
  %735 = vmatpush1.bf16.msra.mxu0 0
  %736 = vmatprep.subr.bf16.mxu0 0
  %737 = vmatpush1.bf16.msra.mxu0 0
  %738 = vmatprep.subr.bf16.mxu0 0
  %739 = vmatpush1.bf16.msra.mxu0 0
  %740 = vmatprep.subr.bf16.mxu0 0
  %741 = vmatpush1.bf16.msra.mxu0 0
  %742 = vmatprep.subr.bf16.mxu0 0
  %743 = vmatpush1.bf16.msra.mxu0 0
  %744 = vmatprep.subr.bf16.mxu0 0
  %745 = vmatpush1.bf16.msra.mxu0 0
  %746 = vmatprep.subr.bf16.mxu0 0
  %747 = vmatpush1.bf16.msra.mxu0 0
  %748 = vmatprep.subr.bf16.mxu0 0
  %749 = vmatpush1.bf16.msra.mxu0 0
  %750 = vmatprep.subr.bf16.mxu0 0
  %751 = vmatpush1.bf16.msra.mxu0 0
  %752 = vmatprep.subr.bf16.mxu0 0
  %753 = vmatpush1.bf16.msra.mxu0 0
  %754 = vmatprep.subr.bf16.mxu0 0
  %755 = vmatpush1.bf16.msra.mxu0 0
  %756 = vmatprep.subr.bf16.mxu0 0
  %757 = vmatpush1.bf16.msra.mxu0 0
  %758 = vmatprep.mubr.bf16.mxu0 0
  %759 = vmatmul.mubr.bf16.gmra.mrb[0].mxu0 %v724
  %v760 = vpop.f32.mrb[0].mxu0
  %v761 = vadd.f32 0.0, %v760
  %v762 = vpop.f32.mrb[0].mxu0
  %v763 = vpop.f32.mrb[0].mxu0
  %v764 = vpop.f32.mrb[0].mxu0
  %765 = vdwg.mxu0
  %v766 = vadd.f32 %v705, %v761
  %v767 = vxor.u32 %v766, 2147483648
  %v768 = vmul.f32 %v767, 1.442695
  %v769 = vpow.pop %v768
  %v770 = vadd.f32 %v769, 1.0
  %v771 = vrcp.pop %v770
  %v772 = vmul.f32 1.0, %v771
  %v773 = vtanh.pop %v766
  %775 = vrot.lane.b32.xlu0 %v703, 32
  %v776 = vpop.permute.xlu0 %775
  %v778 = vmul.f32 %v772, %v776
  %780 = vrot.lane.b32.xlu0 %v773, 64
  %v781 = vpop.permute.xlu0 %780
  %v783 = vmul.f32 %v772, %v781
  %785 = vrot.lane.b32.xlu0 %v783, 32
  %v786 = vpop.permute.xlu0 %785
  %v788 = vadd.f32 %v778, %v786
  %v789 = vtanh.pop %v788
  %791 = vrot.lane.b32.xlu0 %v789, 64
  %v792 = vpop.permute.xlu0 %791
  %v794 = vmul.f32 %v772, %v792
  %796 = vrot.lane.b32.xlu0 %v794, 32
  %v797 = vpop.permute.xlu0 %796
  %799 = vst.msk [vmem:[#allocation2] sm:$0xff] %vm50, %v797
  %801 = vrot.lane.b32.xlu0 %v788, 96
  %v802 = vpop.permute.xlu0 %801
  %804 = vst.msk [vmem:[#allocation3] sm:$0xff] %vm50, %v802
  %v805 = vpack.c.bf16 %v794, %v794
  %v807 = vunpack.c.l.b16 %v805
  %v808 = vpack.c.b16 %v807, %v807
  %809 = vrot.lane.b32.xlu0 %v808, 32
  %v810 = vpop.permute.xlu0 %809
  %s812 = scalar_lea.vmem %s4, 24
  %813 = vst.msk [vmem:[%s812] sm:$0xf] %vm140, %v810
  %v814 = vld [vmem:[#allocation2] sm:$0xff]
  %v815 = vld [vmem:[#allocation3] sm:$0xff]
  %s816 = scalar_lea.vmem %s0, 56
  %v817 = vld [vmem:[%s816] sm:$0xff]
  %v818 = vpack.c.bf16 %v814, %v814
  %v819 = vld [vmem:[%s3] sm:$0xf]
  %v820 = vld [vmem:[%s3 + $0x4] sm:$0xf]
  %v821 = vld [vmem:[%s3 + $0x8] sm:$0xf]
  %v822 = vld [vmem:[%s3 + $0xc] sm:$0xf]
  %v827 = vunpack.c.l.b16 %v819
  %v828 = vunpack.c.l.b16 %v820
  %v829 = vunpack.c.l.b16 %v821
  %v830 = vunpack.c.l.b16 %v822
  %v831 = vpack.c.b16 %v828, %v827
  %v832 = vpack.c.b16 %v830, %v829
  %v836 = vsel %vm50, %v818, 0
  %838 = vmatprep.subr.bf16.mxu0 0
  %839 = vmatpush1.bf16.msra.mxu0 %v831
  %840 = vmatprep.subr.bf16.mxu0 0
  %841 = vmatpush1.bf16.msra.mxu0 %v832
  %842 = vmatprep.subr.bf16.mxu0 0
  %843 = vmatpush1.bf16.msra.mxu0 0
  %844 = vmatprep.subr.bf16.mxu0 0
  %845 = vmatpush1.bf16.msra.mxu0 0
  %846 = vmatprep.subr.bf16.mxu0 0
  %847 = vmatpush1.bf16.msra.mxu0 0
  %848 = vmatprep.subr.bf16.mxu0 0
  %849 = vmatpush1.bf16.msra.mxu0 0
  %850 = vmatprep.subr.bf16.mxu0 0
  %851 = vmatpush1.bf16.msra.mxu0 0
  %852 = vmatprep.subr.bf16.mxu0 0
  %853 = vmatpush1.bf16.msra.mxu0 0
  %854 = vmatprep.subr.bf16.mxu0 0
  %855 = vmatpush1.bf16.msra.mxu0 0
  %856 = vmatprep.subr.bf16.mxu0 0
  %857 = vmatpush1.bf16.msra.mxu0 0
  %858 = vmatprep.subr.bf16.mxu0 0
  %859 = vmatpush1.bf16.msra.mxu0 0
  %860 = vmatprep.subr.bf16.mxu0 0
  %861 = vmatpush1.bf16.msra.mxu0 0
  %862 = vmatprep.subr.bf16.mxu0 0
  %863 = vmatpush1.bf16.msra.mxu0 0
  %864 = vmatprep.subr.bf16.mxu0 0
  %865 = vmatpush1.bf16.msra.mxu0 0
  %866 = vmatprep.subr.bf16.mxu0 0
  %867 = vmatpush1.bf16.msra.mxu0 0
  %868 = vmatprep.subr.bf16.mxu0 0
  %869 = vmatpush1.bf16.msra.mxu0 0
  %870 = vmatprep.mubr.bf16.mxu0 0
  %871 = vmatmul.mubr.bf16.gmra.mrb[0].mxu0 %v836
  %v872 = vpop.f32.mrb[0].mxu0
  %v873 = vadd.f32 0.0, %v872
  %v874 = vpop.f32.mrb[0].mxu0
  %v875 = vpop.f32.mrb[0].mxu0
  %v876 = vpop.f32.mrb[0].mxu0
  %877 = vdwg.mxu0
  %v878 = vadd.f32 %v817, %v873
  %v879 = vxor.u32 %v878, 2147483648
  %v880 = vmul.f32 %v879, 1.442695
  %v881 = vpow.pop %v880
  %v882 = vadd.f32 %v881, 1.0
  %v883 = vrcp.pop %v882
  %v884 = vmul.f32 1.0, %v883
  %v885 = vtanh.pop %v878
  %887 = vrot.lane.b32.xlu0 %v815, 32
  %v888 = vpop.permute.xlu0 %887
  %v890 = vmul.f32 %v884, %v888
  %892 = vrot.lane.b32.xlu0 %v885, 64
  %v893 = vpop.permute.xlu0 %892
  %v895 = vmul.f32 %v884, %v893
  %897 = vrot.lane.b32.xlu0 %v895, 32
  %v898 = vpop.permute.xlu0 %897
  %v900 = vadd.f32 %v890, %v898
  %v901 = vtanh.pop %v900
  %903 = vrot.lane.b32.xlu0 %v901, 64
  %v904 = vpop.permute.xlu0 %903
  %v906 = vmul.f32 %v884, %v904
  %908 = vrot.lane.b32.xlu0 %v906, 32
  %v909 = vpop.permute.xlu0 %908
  %911 = vst.msk [vmem:[#allocation2] sm:$0xff] %vm50, %v909
  %913 = vrot.lane.b32.xlu0 %v900, 96
  %v914 = vpop.permute.xlu0 %913
  %916 = vst.msk [vmem:[#allocation3] sm:$0xff] %vm50, %v914
  %v917 = vpack.c.bf16 %v906, %v906
  %v919 = vunpack.c.l.b16 %v917
  %v920 = vpack.c.b16 %v919, %v919
  %921 = vrot.lane.b32.xlu0 %v920, 32
  %v922 = vpop.permute.xlu0 %921
  %s924 = scalar_lea.vmem %s4, 28
  %925 = vst.msk [vmem:[%s924] sm:$0xf] %vm140, %v922
  %v926 = vld [vmem:[#allocation2] sm:$0xff]
  %927 = vst.msk [vmem:[%s5] sm:$0xff] %vm50, %v926
  %v928 = vld [vmem:[#allocation3] sm:$0xff]
  %929 = vst.msk [vmem:[%s6] sm:$0xff] %vm50, %v928
  // Predicated region
  $region22: #{lstm_generator_forward.6} parent=0 // pred_check
    _
  $region23: #{lstm_generator_forward.6} parent=0 // pred_check_branch
    %931 = sbr.rel (0) target = $region25
  $region24: #{lstm_generator_forward.6} parent=0 // pred_region
    _
  $region25: #{lstm_generator_forward.6} parent=0 // pred_fallthru
    _
  // Predicated region
  $region26: #{lstm_generator_forward.6} parent=0 // pred_check
    _
  $region27: #{lstm_generator_forward.6} parent=0 // pred_check_branch
    %933 = sbr.rel (0) target = $region29
  $region28: #{lstm_generator_forward.6} parent=0 // pred_region
    _
  $region29: #{lstm_generator_forward.6} parent=0 // pred_fallthru
    _
  // Predicated region
  $region30: #{lstm_generator_forward.6} parent=0 // pred_check
    _
  $region31: #{lstm_generator_forward.6} parent=0 // pred_check_branch
    %935 = sbr.rel (0) target = $region33
  $region32: #{lstm_generator_forward.6} parent=0 // pred_region
    _
  $region33: #{lstm_generator_forward.6} parent=0 // pred_fallthru
    _
  // Predicated region
  $region34: #{lstm_generator_forward.6} parent=0 // pred_check
    _
  $region35: #{lstm_generator_forward.6} parent=0 // pred_check_branch
    %937 = sbr.rel (0) target = $region37
  $region36: #{lstm_generator_forward.6} parent=0 // pred_region
    _
  $region37: #{lstm_generator_forward.6} parent=0 // pred_fallthru
    _
  // Predicated region
  $region38: #{lstm_generator_forward.6} parent=0 // pred_check
    _
  $region39: #{lstm_generator_forward.6} parent=0 // pred_check_branch
    %939 = sbr.rel (0) target = $region41
  $region40: #{lstm_generator_forward.6} parent=0 // pred_region
    _
  $region41: #{lstm_generator_forward.6} parent=0 // pred_fallthru
    _
  // Predicated region
  $region42: #{lstm_generator_forward.6} parent=0 // pred_check
    _
  $region43: #{lstm_generator_forward.6} parent=0 // pred_check_branch
    %941 = sbr.rel (0) target = $region45
  $region44: #{lstm_generator_forward.6} parent=0 // pred_region
    _
  $region45: #{lstm_generator_forward.6} parent=0 // pred_fallthru
    _

</llo_original>
